<compile_context>
chip_gen: v7x
topology: tpu7x:2x2x1
jax: 0.10.0
libtpu: 0.0.40
codegen_flags: <defaults>
</compile_context>

<pallas_src>
import math
import functools

import jax
import jax.numpy as jnp
from jax.experimental import pallas as pl
from jax.experimental.pallas import tpu as pltpu


# --------------------------------------------------------------------------- #
# Kernel: one full encoder layer for one batch element.
# --------------------------------------------------------------------------- #
def _encoder_layer_kernel(x_ref,
                          g1_ref, be1_ref,
                          wq_ref, bq_ref, wk_ref, bk_ref, wv_ref, bv_ref,
                          wo_ref, bo_ref,
                          g2_ref, be2_ref,
                          w1_ref, b1_ref, w2_ref, b2_ref,
                          o_ref, *, num_heads, d_k):
    f32 = jnp.float32
    bf16 = jnp.bfloat16

    x = x_ref[0]                                   # (S, D) f32 residual stream
    S, D = x.shape

    def layer_norm(t, g_ref, b_ref):
        mean = jnp.mean(t, axis=-1, keepdims=True)
        # torch.Tensor.std default: unbiased (divide by D-1); eps added to std.
        std = jnp.sqrt(jnp.sum((t - mean) ** 2, axis=-1, keepdims=True) / (D - 1))
        return g_ref[...] * (t - mean) / (std + 1e-6) + b_ref[...]

    # ---- Sublayer 0: pre-norm multi-headed self-attention + residual ---- #
    xn = layer_norm(x, g1_ref, be1_ref).astype(bf16)

    # nn.Linear with host-pre-transposed weights: y = x @ W_t + b (no .T here).
    q = jnp.dot(xn, wq_ref[...], preferred_element_type=f32) + bq_ref[...]
    k = jnp.dot(xn, wk_ref[...], preferred_element_type=f32) + bk_ref[...]
    v = jnp.dot(xn, wv_ref[...], preferred_element_type=f32) + bv_ref[...]

    q = (q * (1.0 / math.sqrt(d_k))).astype(bf16)  # scale folded into q once
    k = k.astype(bf16)
    v = v.astype(bf16)

    # Static src_mask from Transformer.forward: key position 0 is masked out.
    key_pos = jax.lax.broadcasted_iota(jnp.int32, (1, S), 1)

    # Residual + output-projection bias; heads accumulate below (no concat).
    y = x + bo_ref[...]

    for h in range(num_heads):
        lo = h * d_k
        qh = q[:, lo:lo + d_k]                     # (S, d_k)
        kh = k[:, lo:lo + d_k]
        vh = v[:, lo:lo + d_k]

        # scores: contract the last dim of both operands (no kh transpose).
        s = jax.lax.dot_general(qh, kh, (((1,), (1,)), ((), ())),
                                preferred_element_type=f32)        # (S, S)
        s = jnp.where(key_pos == 0, -1e9, s)       # masked_fill(mask == 0, -1e9)

        # Numerically stable softmax; normalize via EUP reciprocal.
        m = jnp.max(s, axis=-1, keepdims=True)
        e = jnp.exp(s - m)
        p = e * pl.reciprocal(jnp.sum(e, axis=-1, keepdims=True), approx=True)

        ctx = jnp.dot(p.astype(bf16), vh, preferred_element_type=f32)   # (S, d_k)
        # Accumulate output projection per head (Wo pre-split per head on host).
        y = y + jnp.dot(ctx.astype(bf16), wo_ref[h], preferred_element_type=f32)

    x1 = y

    # ---- Sublayer 1: pre-norm position-wise feed-forward + residual ---- #
    xn2 = layer_norm(x1, g2_ref, be2_ref).astype(bf16)
    hdn = jnp.dot(xn2, w1_ref[...], preferred_element_type=f32) + b1_ref[...]
    hdn = jnp.maximum(hdn, 0.0).astype(bf16)
    out = x1 + jnp.dot(hdn, w2_ref[...], preferred_element_type=f32) + b2_ref[...]

    o_ref[0] = out.astype(o_ref.dtype)


# --------------------------------------------------------------------------- #
# Host-side wrapper.
# --------------------------------------------------------------------------- #
def _prep_layer(p, num_heads):
    """One-time host relayout: transpose nn.Linear weights to (in, out), split
    the output projection per head, cast matmul weights to bf16, and make the
    biases / LayerNorm params lane-aligned (1, D) rows."""
    bf16 = jnp.bfloat16
    f32 = jnp.float32
    d_model = p["wq"].shape[0]
    d_k = d_model // num_heads
    row = lambda a: a.reshape(1, -1).astype(f32)
    return (
        row(p["ln1_g"]), row(p["ln1_b"]),
        p["wq"].T.astype(bf16), row(p["bq"]),
        p["wk"].T.astype(bf16), row(p["bk"]),
        p["wv"].T.astype(bf16), row(p["bv"]),
        p["wo"].T.reshape(num_heads, d_k, d_model).astype(bf16), row(p["bo"]),
        row(p["ln2_g"]), row(p["ln2_b"]),
        p["w1"].T.astype(bf16), row(p["b1"]),
        p["w2"].T.astype(bf16), row(p["b2"]),
    )


def transformer_forward(x, layer_params, *, num_heads):
    """x: (B, S, D) float32. layer_params: list of per-layer dicts (torch layout)."""
    B, S, D = x.shape
    assert D % num_heads == 0
    d_k = D // num_heads

    kernel = functools.partial(_encoder_layer_kernel,
                               num_heads=num_heads, d_k=d_k)
    io_spec = pl.BlockSpec((1, S, D), lambda b: (b, 0, 0))

    for p in layer_params:
        consts = _prep_layer(p, num_heads)
        const_specs = [
            pl.BlockSpec(c.shape, lambda b, _n=c.ndim: (0,) * _n) for c in consts
        ]
        x = pl.pallas_call(
            kernel,
            out_shape=jax.ShapeDtypeStruct((B, S, D), jnp.float32),
            grid=(B,),
            in_specs=[io_spec] + const_specs,
            out_specs=io_spec,
            compiler_params=pltpu.CompilerParams(
                dimension_semantics=("parallel",)),
        )(x, *consts)
    return x


# --------------------------------------------------------------------------- #
# Pure-JAX (f32) reference mirroring the PyTorch module (eval mode).
# --------------------------------------------------------------------------- #
def _reference_transformer(x, layer_params, *, num_heads):
    B, S, D = x.shape
    d_k = D // num_heads
    # src_mask from Transformer.forward: zero at key position 0, ones elsewhere.
    src_mask = jnp.concatenate(
        [jnp.zeros((B, 1, 1), jnp.float32), jnp.ones((B, 1, S - 1), jnp.float32)],
        axis=2)
    mask = src_mask[:, None, :, :]                 # unsqueeze(1) -> (B,1,1,S)

    def layer_norm(t, g, b, eps=1e-6):
        mean = jnp.mean(t, axis=-1, keepdims=True)
        std = jnp.sqrt(jnp.sum((t - mean) ** 2, axis=-1, keepdims=True)
                       / (t.shape[-1] - 1))
        return g * (t - mean) / (std + eps) + b

    def lin(t, w, b):
        return t @ w.T + b

    def mha(xin, p):
        def split(t):
            return t.reshape(B, S, num_heads, d_k).transpose(0, 2, 1, 3)
        q = split(lin(xin, p["wq"], p["bq"]))
        k = split(lin(xin, p["wk"], p["bk"]))
        v = split(lin(xin, p["wv"], p["bv"]))
        scores = jnp.einsum("bhqd,bhkd->bhqk", q, k) / math.sqrt(d_k)
        scores = jnp.where(mask == 0, -1e9, scores)
        pat = jax.nn.softmax(scores, axis=-1)
        ctx = jnp.einsum("bhqk,bhkd->bhqd", pat, v)
        ctx = ctx.transpose(0, 2, 1, 3).reshape(B, S, D)
        return lin(ctx, p["wo"], p["bo"])

    for p in layer_params:
        x = x + mha(layer_norm(x, p["ln1_g"], p["ln1_b"]), p)
        xn = layer_norm(x, p["ln2_g"], p["ln2_b"])
        x = x + lin(jnp.maximum(lin(xn, p["w1"], p["b1"]), 0.0), p["w2"], p["b2"])
    return x


def _init_params(key, d_model, d_hidden, n_layers):
    """Deterministic params mirroring the module: xavier_uniform for dim>1
    weights, nn.Linear-style biases, LayerNorm gamma=1 / beta=0."""
    def xavier(k, shape):
        bound = math.sqrt(6.0 / (shape[0] + shape[1]))
        return jax.random.uniform(k, shape, jnp.float32, -bound, bound)

    def bias(k, shape, fan_in):
        bound = 1.0 / math.sqrt(fan_in)
        return jax.random.uniform(k, shape, jnp.float32, -bound, bound)

    layers = []
    for lk in jax.random.split(key, n_layers):
        ks = jax.random.split(lk, 12)
        layers.append({
            "ln1_g": jnp.ones((d_model,), jnp.float32),
            "ln1_b": jnp.zeros((d_model,), jnp.float32),
            "wq": xavier(ks[0], (d_model, d_model)),
            "bq": bias(ks[1], (d_model,), d_model),
            "wk": xavier(ks[2], (d_model, d_model)),
            "bk": bias(ks[3], (d_model,), d_model),
            "wv": xavier(ks[4], (d_model, d_model)),
            "bv": bias(ks[5], (d_model,), d_model),
            "wo": xavier(ks[6], (d_model, d_model)),
            "bo": bias(ks[7], (d_model,), d_model),
            "ln2_g": jnp.ones((d_model,), jnp.float32),
            "ln2_b": jnp.zeros((d_model,), jnp.float32),
            "w1": xavier(ks[8], (d_hidden, d_model)),
            "b1": bias(ks[9], (d_hidden,), d_model),
            "w2": xavier(ks[10], (d_model, d_hidden)),
            "b2": bias(ks[11], (d_model,), d_hidden),
        })
    return layers


if __name__ == "__main__":
    # batch, seq, d_model, d_hidden, heads, layers  (d_k = 8)
    B, S, D, DH, H, N = 2, 8, 32, 64, 4, 2

    root = jax.random.PRNGKey(0)
    kx, kp = jax.random.split(root)

    x = jax.random.normal(kx, (B, S, D), jnp.float32)
    params = _init_params(kp, D, DH, N)

    out = transformer_forward(x, params, num_heads=H)
    out = jax.block_until_ready(out)

    ref = _reference_transformer(x, params, num_heads=H)
    assert out.shape == (B, S, D)
    # Kernel runs its matmuls in bf16 (f32 accumulation) while the reference is
    # full f32, so the tolerance is sized for ~8 mantissa bits through 2 layers.
    assert jnp.allclose(out, ref, atol=5e-2, rtol=5e-2), (
        "mismatch vs reference: max abs diff = "
        f"{float(jnp.max(jnp.abs(out - ref)))}")

    print("KERNEL_OK")
</pallas_src>

<mosaic_0001>
module attributes {stable_mosaic.version = 11 : i64} {
  func.func @_encoder_layer_kernel(%arg0: i32, %arg1: memref<1x8x32xf32, #tpu.memory_space<vmem>>, %arg2: memref<1x32xf32, #tpu.memory_space<vmem>>, %arg3: memref<1x32xf32, #tpu.memory_space<vmem>>, %arg4: memref<32x32xbf16, #tpu.memory_space<vmem>>, %arg5: memref<1x32xf32, #tpu.memory_space<vmem>>, %arg6: memref<32x32xbf16, #tpu.memory_space<vmem>>, %arg7: memref<1x32xf32, #tpu.memory_space<vmem>>, %arg8: memref<32x32xbf16, #tpu.memory_space<vmem>>, %arg9: memref<1x32xf32, #tpu.memory_space<vmem>>, %arg10: memref<4x8x32xbf16, #tpu.memory_space<vmem>>, %arg11: memref<1x32xf32, #tpu.memory_space<vmem>>, %arg12: memref<1x32xf32, #tpu.memory_space<vmem>>, %arg13: memref<1x32xf32, #tpu.memory_space<vmem>>, %arg14: memref<32x64xbf16, #tpu.memory_space<vmem>>, %arg15: memref<1x64xf32, #tpu.memory_space<vmem>>, %arg16: memref<64x32xbf16, #tpu.memory_space<vmem>>, %arg17: memref<1x32xf32, #tpu.memory_space<vmem>>, %arg18: memref<1x8x32xf32, #tpu.memory_space<vmem>>) attributes {dimension_semantics = [#tpu.dimension_semantics<parallel>], iteration_bounds = array<i64: 2>, scalar_prefetch = 0 : i64, scratch_operands = 0 : i64, tpu.core_type = #tpu.core_type<tc>, window_params = [{transform_indices = @transform_0, window_bounds = array<i64: 1, 8, 32>}, {pipeline_mode = #tpu.pipeline_mode<synchronous>, transform_indices = @transform_1, window_bounds = array<i64: 1, 32>}, {pipeline_mode = #tpu.pipeline_mode<synchronous>, transform_indices = @transform_2, window_bounds = array<i64: 1, 32>}, {pipeline_mode = #tpu.pipeline_mode<synchronous>, transform_indices = @transform_3, window_bounds = array<i64: 32, 32>}, {pipeline_mode = #tpu.pipeline_mode<synchronous>, transform_indices = @transform_4, window_bounds = array<i64: 1, 32>}, {pipeline_mode = #tpu.pipeline_mode<synchronous>, transform_indices = @transform_5, window_bounds = array<i64: 32, 32>}, {pipeline_mode = #tpu.pipeline_mode<synchronous>, transform_indices = @transform_6, window_bounds = array<i64: 1, 32>}, {pipeline_mode = #tpu.pipeline_mode<synchronous>, transform_indices = @transform_7, window_bounds = array<i64: 32, 32>}, {pipeline_mode = #tpu.pipeline_mode<synchronous>, transform_indices = @transform_8, window_bounds = array<i64: 1, 32>}, {pipeline_mode = #tpu.pipeline_mode<synchronous>, transform_indices = @transform_9, window_bounds = array<i64: 4, 8, 32>}, {pipeline_mode = #tpu.pipeline_mode<synchronous>, transform_indices = @transform_10, window_bounds = array<i64: 1, 32>}, {pipeline_mode = #tpu.pipeline_mode<synchronous>, transform_indices = @transform_11, window_bounds = array<i64: 1, 32>}, {pipeline_mode = #tpu.pipeline_mode<synchronous>, transform_indices = @transform_12, window_bounds = array<i64: 1, 32>}, {pipeline_mode = #tpu.pipeline_mode<synchronous>, transform_indices = @transform_13, window_bounds = array<i64: 32, 64>}, {pipeline_mode = #tpu.pipeline_mode<synchronous>, transform_indices = @transform_14, window_bounds = array<i64: 1, 64>}, {pipeline_mode = #tpu.pipeline_mode<synchronous>, transform_indices = @transform_15, window_bounds = array<i64: 64, 32>}, {pipeline_mode = #tpu.pipeline_mode<synchronous>, transform_indices = @transform_16, window_bounds = array<i64: 1, 32>}, {transform_indices = @transform_17, window_bounds = array<i64: 1, 8, 32>}]} {
    %c0 = arith.constant 0 : index
    %c0_0 = arith.constant 0 : index
    %c0_1 = arith.constant 0 : index
    %0 = vector.load %arg1[%c0, %c0_0, %c0_1] : memref<1x8x32xf32, #tpu.memory_space<vmem>>, vector<1x8x32xf32>
    %1 = vector.shape_cast %0 : vector<1x8x32xf32> to vector<8x32xf32>
    %cst = arith.constant dense<0.000000e+00> : vector<8xf32>
    %2 = vector.multi_reduction <add>, %1, %cst [1] : vector<8x32xf32> to vector<8xf32>
    %3 = vector.shape_cast %2 : vector<8xf32> to vector<8x1xf32>
    %cst_2 = arith.constant 3.200000e+01 : f32
    %4 = vector.broadcast %cst_2 : f32 to vector<8x1xf32>
    %5 = arith.divf %3, %4 : vector<8x1xf32>
    %6 = vector.broadcast %5 : vector<8x1xf32> to vector<8x32xf32>
    %7 = arith.subf %1, %6 : vector<8x32xf32>
    %8 = arith.mulf %7, %7 : vector<8x32xf32>
    %cst_3 = arith.constant dense<0.000000e+00> : vector<8xf32>
    %9 = vector.multi_reduction <add>, %8, %cst_3 [1] : vector<8x32xf32> to vector<8xf32>
    %10 = vector.shape_cast %9 : vector<8xf32> to vector<8x1xf32>
    %cst_4 = arith.constant 3.100000e+01 : f32
    %11 = vector.broadcast %cst_4 : f32 to vector<8x1xf32>
    %12 = arith.divf %10, %11 : vector<8x1xf32>
    %13 = math.sqrt %12 : vector<8x1xf32>
    %c0_5 = arith.constant 0 : index
    %c0_6 = arith.constant 0 : index
    %14 = vector.load %arg2[%c0_5, %c0_6] : memref<1x32xf32, #tpu.memory_space<vmem>>, vector<1x32xf32>
    %15 = vector.broadcast %5 : vector<8x1xf32> to vector<8x32xf32>
    %16 = arith.subf %1, %15 : vector<8x32xf32>
    %17 = vector.broadcast %14 : vector<1x32xf32> to vector<8x32xf32>
    %18 = arith.mulf %17, %16 : vector<8x32xf32>
    %cst_7 = arith.constant 9.99999997E-7 : f32
    %19 = vector.broadcast %cst_7 : f32 to vector<8x1xf32>
    %20 = arith.addf %13, %19 : vector<8x1xf32>
    %21 = vector.broadcast %20 : vector<8x1xf32> to vector<8x32xf32>
    %22 = arith.divf %18, %21 : vector<8x32xf32>
    %c0_8 = arith.constant 0 : index
    %c0_9 = arith.constant 0 : index
    %23 = vector.load %arg3[%c0_8, %c0_9] : memref<1x32xf32, #tpu.memory_space<vmem>>, vector<1x32xf32>
    %24 = vector.broadcast %23 : vector<1x32xf32> to vector<8x32xf32>
    %25 = arith.addf %22, %24 : vector<8x32xf32>
    %26 = arith.truncf %25 : vector<8x32xf32> to vector<8x32xbf16>
    %c0_10 = arith.constant 0 : index
    %c0_11 = arith.constant 0 : index
    %27 = vector.load %arg4[%c0_10, %c0_11] : memref<32x32xbf16, #tpu.memory_space<vmem>>, vector<32x32xbf16>
    %cst_12 = arith.constant dense<0.000000e+00> : vector<8x32xf32>
    %28 = tpu.matmul %26, %27, %cst_12 {dimension_numbers = #tpu.dot_dimension_numbers<[1], [0], [0], [1], [0, 0, 1, 1], [], []>} : vector<8x32xbf16>, vector<32x32xbf16>, vector<8x32xf32> -> vector<8x32xf32>
    %c0_13 = arith.constant 0 : index
    %c0_14 = arith.constant 0 : index
    %29 = vector.load %arg5[%c0_13, %c0_14] : memref<1x32xf32, #tpu.memory_space<vmem>>, vector<1x32xf32>
    %30 = vector.broadcast %29 : vector<1x32xf32> to vector<8x32xf32>
    %31 = arith.addf %28, %30 : vector<8x32xf32>
    %c0_15 = arith.constant 0 : index
    %c0_16 = arith.constant 0 : index
    %32 = vector.load %arg6[%c0_15, %c0_16] : memref<32x32xbf16, #tpu.memory_space<vmem>>, vector<32x32xbf16>
    %cst_17 = arith.constant dense<0.000000e+00> : vector<8x32xf32>
    %33 = tpu.matmul %26, %32, %cst_17 {dimension_numbers = #tpu.dot_dimension_numbers<[1], [0], [0], [1], [0, 0, 1, 1], [], []>} : vector<8x32xbf16>, vector<32x32xbf16>, vector<8x32xf32> -> vector<8x32xf32>
    %c0_18 = arith.constant 0 : index
    %c0_19 = arith.constant 0 : index
    %34 = vector.load %arg7[%c0_18, %c0_19] : memref<1x32xf32, #tpu.memory_space<vmem>>, vector<1x32xf32>
    %35 = vector.broadcast %34 : vector<1x32xf32> to vector<8x32xf32>
    %36 = arith.addf %33, %35 : vector<8x32xf32>
    %c0_20 = arith.constant 0 : index
    %c0_21 = arith.constant 0 : index
    %37 = vector.load %arg8[%c0_20, %c0_21] : memref<32x32xbf16, #tpu.memory_space<vmem>>, vector<32x32xbf16>
    %cst_22 = arith.constant dense<0.000000e+00> : vector<8x32xf32>
    %38 = tpu.matmul %26, %37, %cst_22 {dimension_numbers = #tpu.dot_dimension_numbers<[1], [0], [0], [1], [0, 0, 1, 1], [], []>} : vector<8x32xbf16>, vector<32x32xbf16>, vector<8x32xf32> -> vector<8x32xf32>
    %c0_23 = arith.constant 0 : index
    %c0_24 = arith.constant 0 : index
    %39 = vector.load %arg9[%c0_23, %c0_24] : memref<1x32xf32, #tpu.memory_space<vmem>>, vector<1x32xf32>
    %40 = vector.broadcast %39 : vector<1x32xf32> to vector<8x32xf32>
    %41 = arith.addf %38, %40 : vector<8x32xf32>
    %cst_25 = arith.constant 0.353553385 : f32
    %42 = vector.broadcast %cst_25 : f32 to vector<8x32xf32>
    %43 = arith.mulf %31, %42 : vector<8x32xf32>
    %44 = arith.truncf %43 : vector<8x32xf32> to vector<8x32xbf16>
    %45 = arith.truncf %36 : vector<8x32xf32> to vector<8x32xbf16>
    %46 = arith.truncf %41 : vector<8x32xf32> to vector<8x32xbf16>
    %47 = tpu.iota {dimensions = array<i32: 1>} : vector<1x8xi32>
    %c0_26 = arith.constant 0 : index
    %c0_27 = arith.constant 0 : index
    %48 = vector.load %arg11[%c0_26, %c0_27] : memref<1x32xf32, #tpu.memory_space<vmem>>, vector<1x32xf32>
    %49 = vector.broadcast %48 : vector<1x32xf32> to vector<8x32xf32>
    %50 = arith.addf %1, %49 : vector<8x32xf32>
    %51 = vector.extract_strided_slice %44 {offsets = [0, 0], sizes = [8, 8], strides = [1, 1]} : vector<8x32xbf16> to vector<8x8xbf16>
    %52 = vector.extract_strided_slice %45 {offsets = [0, 0], sizes = [8, 8], strides = [1, 1]} : vector<8x32xbf16> to vector<8x8xbf16>
    %53 = vector.extract_strided_slice %46 {offsets = [0, 0], sizes = [8, 8], strides = [1, 1]} : vector<8x32xbf16> to vector<8x8xbf16>
    %cst_28 = arith.constant dense<0.000000e+00> : vector<8x8xf32>
    %54 = tpu.matmul %51, %52, %cst_28 {dimension_numbers = #tpu.dot_dimension_numbers<[1], [1], [0], [0], [0, 0, 1, 0], [], []>} : vector<8x8xbf16>, vector<8x8xbf16>, vector<8x8xf32> -> vector<8x8xf32>
    %c0_i32 = arith.constant 0 : i32
    %55 = vector.broadcast %c0_i32 : i32 to vector<1x8xi32>
    %56 = arith.cmpi eq, %47, %55 : vector<1x8xi32>
    %cst_29 = arith.constant -1.000000e+09 : f32
    %57 = vector.shape_cast %56 : vector<1x8xi1> to vector<1x8xi1>
    %58 = vector.broadcast %57 : vector<1x8xi1> to vector<8x8xi1>
    %59 = vector.broadcast %cst_29 : f32 to vector<8x8xf32>
    %60 = arith.select %58, %59, %54 : vector<8x8xi1>, vector<8x8xf32>
    %cst_30 = arith.constant dense<0xFF800000> : vector<8xf32>
    %61 = vector.multi_reduction <maximumf>, %60, %cst_30 [1] : vector<8x8xf32> to vector<8xf32>
    %62 = vector.shape_cast %61 : vector<8xf32> to vector<8x1xf32>
    %63 = vector.broadcast %62 : vector<8x1xf32> to vector<8x8xf32>
    %64 = arith.subf %60, %63 : vector<8x8xf32>
    %65 = math.exp %64 : vector<8x8xf32>
    %cst_31 = arith.constant dense<0.000000e+00> : vector<8xf32>
    %66 = vector.multi_reduction <add>, %65, %cst_31 [1] : vector<8x8xf32> to vector<8xf32>
    %67 = vector.shape_cast %66 : vector<8xf32> to vector<8x1xf32>
    %68 = tpu.reciprocal %67 {approx = true} : vector<8x1xf32> -> vector<8x1xf32>
    %69 = vector.broadcast %68 : vector<8x1xf32> to vector<8x8xf32>
    %70 = arith.mulf %65, %69 : vector<8x8xf32>
    %71 = arith.truncf %70 : vector<8x8xf32> to vector<8x8xbf16>
    %cst_32 = arith.constant dense<0.000000e+00> : vector<8x8xf32>
    %72 = tpu.matmul %71, %53, %cst_32 {dimension_numbers = #tpu.dot_dimension_numbers<[1], [0], [0], [1], [0, 0, 1, 1], [], []>} : vector<8x8xbf16>, vector<8x8xbf16>, vector<8x8xf32> -> vector<8x8xf32>
    %73 = arith.truncf %72 : vector<8x8xf32> to vector<8x8xbf16>
    %c0_33 = arith.constant 0 : index
    %c0_34 = arith.constant 0 : index
    %c0_35 = arith.constant 0 : index
    %74 = vector.load %arg10[%c0_33, %c0_34, %c0_35] : memref<4x8x32xbf16, #tpu.memory_space<vmem>>, vector<1x8x32xbf16>
    %75 = vector.shape_cast %74 : vector<1x8x32xbf16> to vector<8x32xbf16>
    %cst_36 = arith.constant dense<0.000000e+00> : vector<8x32xf32>
    %76 = tpu.matmul %73, %75, %cst_36 {dimension_numbers = #tpu.dot_dimension_numbers<[1], [0], [0], [1], [0, 0, 1, 1], [], []>} : vector<8x8xbf16>, vector<8x32xbf16>, vector<8x32xf32> -> vector<8x32xf32>
    %77 = arith.addf %50, %76 : vector<8x32xf32>
    %78 = vector.extract_strided_slice %44 {offsets = [0, 8], sizes = [8, 8], strides = [1, 1]} : vector<8x32xbf16> to vector<8x8xbf16>
    %79 = vector.extract_strided_slice %45 {offsets = [0, 8], sizes = [8, 8], strides = [1, 1]} : vector<8x32xbf16> to vector<8x8xbf16>
    %80 = vector.extract_strided_slice %46 {offsets = [0, 8], sizes = [8, 8], strides = [1, 1]} : vector<8x32xbf16> to vector<8x8xbf16>
    %cst_37 = arith.constant dense<0.000000e+00> : vector<8x8xf32>
    %81 = tpu.matmul %78, %79, %cst_37 {dimension_numbers = #tpu.dot_dimension_numbers<[1], [1], [0], [0], [0, 0, 1, 0], [], []>} : vector<8x8xbf16>, vector<8x8xbf16>, vector<8x8xf32> -> vector<8x8xf32>
    %c0_i32_38 = arith.constant 0 : i32
    %82 = vector.broadcast %c0_i32_38 : i32 to vector<1x8xi32>
    %83 = arith.cmpi eq, %47, %82 : vector<1x8xi32>
    %cst_39 = arith.constant -1.000000e+09 : f32
    %84 = vector.shape_cast %83 : vector<1x8xi1> to vector<1x8xi1>
    %85 = vector.broadcast %84 : vector<1x8xi1> to vector<8x8xi1>
    %86 = vector.broadcast %cst_39 : f32 to vector<8x8xf32>
    %87 = arith.select %85, %86, %81 : vector<8x8xi1>, vector<8x8xf32>
    %cst_40 = arith.constant dense<0xFF800000> : vector<8xf32>
    %88 = vector.multi_reduction <maximumf>, %87, %cst_40 [1] : vector<8x8xf32> to vector<8xf32>
    %89 = vector.shape_cast %88 : vector<8xf32> to vector<8x1xf32>
    %90 = vector.broadcast %89 : vector<8x1xf32> to vector<8x8xf32>
    %91 = arith.subf %87, %90 : vector<8x8xf32>
    %92 = math.exp %91 : vector<8x8xf32>
    %cst_41 = arith.constant dense<0.000000e+00> : vector<8xf32>
    %93 = vector.multi_reduction <add>, %92, %cst_41 [1] : vector<8x8xf32> to vector<8xf32>
    %94 = vector.shape_cast %93 : vector<8xf32> to vector<8x1xf32>
    %95 = tpu.reciprocal %94 {approx = true} : vector<8x1xf32> -> vector<8x1xf32>
    %96 = vector.broadcast %95 : vector<8x1xf32> to vector<8x8xf32>
    %97 = arith.mulf %92, %96 : vector<8x8xf32>
    %98 = arith.truncf %97 : vector<8x8xf32> to vector<8x8xbf16>
    %cst_42 = arith.constant dense<0.000000e+00> : vector<8x8xf32>
    %99 = tpu.matmul %98, %80, %cst_42 {dimension_numbers = #tpu.dot_dimension_numbers<[1], [0], [0], [1], [0, 0, 1, 1], [], []>} : vector<8x8xbf16>, vector<8x8xbf16>, vector<8x8xf32> -> vector<8x8xf32>
    %100 = arith.truncf %99 : vector<8x8xf32> to vector<8x8xbf16>
    %c1 = arith.constant 1 : index
    %c0_43 = arith.constant 0 : index
    %c0_44 = arith.constant 0 : index
    %101 = vector.load %arg10[%c1, %c0_43, %c0_44] : memref<4x8x32xbf16, #tpu.memory_space<vmem>>, vector<1x8x32xbf16>
    %102 = vector.shape_cast %101 : vector<1x8x32xbf16> to vector<8x32xbf16>
    %cst_45 = arith.constant dense<0.000000e+00> : vector<8x32xf32>
    %103 = tpu.matmul %100, %102, %cst_45 {dimension_numbers = #tpu.dot_dimension_numbers<[1], [0], [0], [1], [0, 0, 1, 1], [], []>} : vector<8x8xbf16>, vector<8x32xbf16>, vector<8x32xf32> -> vector<8x32xf32>
    %104 = arith.addf %77, %103 : vector<8x32xf32>
    %105 = vector.extract_strided_slice %44 {offsets = [0, 16], sizes = [8, 8], strides = [1, 1]} : vector<8x32xbf16> to vector<8x8xbf16>
    %106 = vector.extract_strided_slice %45 {offsets = [0, 16], sizes = [8, 8], strides = [1, 1]} : vector<8x32xbf16> to vector<8x8xbf16>
    %107 = vector.extract_strided_slice %46 {offsets = [0, 16], sizes = [8, 8], strides = [1, 1]} : vector<8x32xbf16> to vector<8x8xbf16>
    %cst_46 = arith.constant dense<0.000000e+00> : vector<8x8xf32>
    %108 = tpu.matmul %105, %106, %cst_46 {dimension_numbers = #tpu.dot_dimension_numbers<[1], [1], [0], [0], [0, 0, 1, 0], [], []>} : vector<8x8xbf16>, vector<8x8xbf16>, vector<8x8xf32> -> vector<8x8xf32>
    %c0_i32_47 = arith.constant 0 : i32
    %109 = vector.broadcast %c0_i32_47 : i32 to vector<1x8xi32>
    %110 = arith.cmpi eq, %47, %109 : vector<1x8xi32>
    %cst_48 = arith.constant -1.000000e+09 : f32
    %111 = vector.shape_cast %110 : vector<1x8xi1> to vector<1x8xi1>
    %112 = vector.broadcast %111 : vector<1x8xi1> to vector<8x8xi1>
    %113 = vector.broadcast %cst_48 : f32 to vector<8x8xf32>
    %114 = arith.select %112, %113, %108 : vector<8x8xi1>, vector<8x8xf32>
    %cst_49 = arith.constant dense<0xFF800000> : vector<8xf32>
    %115 = vector.multi_reduction <maximumf>, %114, %cst_49 [1] : vector<8x8xf32> to vector<8xf32>
    %116 = vector.shape_cast %115 : vector<8xf32> to vector<8x1xf32>
    %117 = vector.broadcast %116 : vector<8x1xf32> to vector<8x8xf32>
    %118 = arith.subf %114, %117 : vector<8x8xf32>
    %119 = math.exp %118 : vector<8x8xf32>
    %cst_50 = arith.constant dense<0.000000e+00> : vector<8xf32>
    %120 = vector.multi_reduction <add>, %119, %cst_50 [1] : vector<8x8xf32> to vector<8xf32>
    %121 = vector.shape_cast %120 : vector<8xf32> to vector<8x1xf32>
    %122 = tpu.reciprocal %121 {approx = true} : vector<8x1xf32> -> vector<8x1xf32>
    %123 = vector.broadcast %122 : vector<8x1xf32> to vector<8x8xf32>
    %124 = arith.mulf %119, %123 : vector<8x8xf32>
    %125 = arith.truncf %124 : vector<8x8xf32> to vector<8x8xbf16>
    %cst_51 = arith.constant dense<0.000000e+00> : vector<8x8xf32>
    %126 = tpu.matmul %125, %107, %cst_51 {dimension_numbers = #tpu.dot_dimension_numbers<[1], [0], [0], [1], [0, 0, 1, 1], [], []>} : vector<8x8xbf16>, vector<8x8xbf16>, vector<8x8xf32> -> vector<8x8xf32>
    %127 = arith.truncf %126 : vector<8x8xf32> to vector<8x8xbf16>
    %c2 = arith.constant 2 : index
    %c0_52 = arith.constant 0 : index
    %c0_53 = arith.constant 0 : index
    %128 = vector.load %arg10[%c2, %c0_52, %c0_53] : memref<4x8x32xbf16, #tpu.memory_space<vmem>>, vector<1x8x32xbf16>
    %129 = vector.shape_cast %128 : vector<1x8x32xbf16> to vector<8x32xbf16>
    %cst_54 = arith.constant dense<0.000000e+00> : vector<8x32xf32>
    %130 = tpu.matmul %127, %129, %cst_54 {dimension_numbers = #tpu.dot_dimension_numbers<[1], [0], [0], [1], [0, 0, 1, 1], [], []>} : vector<8x8xbf16>, vector<8x32xbf16>, vector<8x32xf32> -> vector<8x32xf32>
    %131 = arith.addf %104, %130 : vector<8x32xf32>
    %132 = vector.extract_strided_slice %44 {offsets = [0, 24], sizes = [8, 8], strides = [1, 1]} : vector<8x32xbf16> to vector<8x8xbf16>
    %133 = vector.extract_strided_slice %45 {offsets = [0, 24], sizes = [8, 8], strides = [1, 1]} : vector<8x32xbf16> to vector<8x8xbf16>
    %134 = vector.extract_strided_slice %46 {offsets = [0, 24], sizes = [8, 8], strides = [1, 1]} : vector<8x32xbf16> to vector<8x8xbf16>
    %cst_55 = arith.constant dense<0.000000e+00> : vector<8x8xf32>
    %135 = tpu.matmul %132, %133, %cst_55 {dimension_numbers = #tpu.dot_dimension_numbers<[1], [1], [0], [0], [0, 0, 1, 0], [], []>} : vector<8x8xbf16>, vector<8x8xbf16>, vector<8x8xf32> -> vector<8x8xf32>
    %c0_i32_56 = arith.constant 0 : i32
    %136 = vector.broadcast %c0_i32_56 : i32 to vector<1x8xi32>
    %137 = arith.cmpi eq, %47, %136 : vector<1x8xi32>
    %cst_57 = arith.constant -1.000000e+09 : f32
    %138 = vector.shape_cast %137 : vector<1x8xi1> to vector<1x8xi1>
    %139 = vector.broadcast %138 : vector<1x8xi1> to vector<8x8xi1>
    %140 = vector.broadcast %cst_57 : f32 to vector<8x8xf32>
    %141 = arith.select %139, %140, %135 : vector<8x8xi1>, vector<8x8xf32>
    %cst_58 = arith.constant dense<0xFF800000> : vector<8xf32>
    %142 = vector.multi_reduction <maximumf>, %141, %cst_58 [1] : vector<8x8xf32> to vector<8xf32>
    %143 = vector.shape_cast %142 : vector<8xf32> to vector<8x1xf32>
    %144 = vector.broadcast %143 : vector<8x1xf32> to vector<8x8xf32>
    %145 = arith.subf %141, %144 : vector<8x8xf32>
    %146 = math.exp %145 : vector<8x8xf32>
    %cst_59 = arith.constant dense<0.000000e+00> : vector<8xf32>
    %147 = vector.multi_reduction <add>, %146, %cst_59 [1] : vector<8x8xf32> to vector<8xf32>
    %148 = vector.shape_cast %147 : vector<8xf32> to vector<8x1xf32>
    %149 = tpu.reciprocal %148 {approx = true} : vector<8x1xf32> -> vector<8x1xf32>
    %150 = vector.broadcast %149 : vector<8x1xf32> to vector<8x8xf32>
    %151 = arith.mulf %146, %150 : vector<8x8xf32>
    %152 = arith.truncf %151 : vector<8x8xf32> to vector<8x8xbf16>
    %cst_60 = arith.constant dense<0.000000e+00> : vector<8x8xf32>
    %153 = tpu.matmul %152, %134, %cst_60 {dimension_numbers = #tpu.dot_dimension_numbers<[1], [0], [0], [1], [0, 0, 1, 1], [], []>} : vector<8x8xbf16>, vector<8x8xbf16>, vector<8x8xf32> -> vector<8x8xf32>
    %154 = arith.truncf %153 : vector<8x8xf32> to vector<8x8xbf16>
    %c3 = arith.constant 3 : index
    %c0_61 = arith.constant 0 : index
    %c0_62 = arith.constant 0 : index
    %155 = vector.load %arg10[%c3, %c0_61, %c0_62] : memref<4x8x32xbf16, #tpu.memory_space<vmem>>, vector<1x8x32xbf16>
    %156 = vector.shape_cast %155 : vector<1x8x32xbf16> to vector<8x32xbf16>
    %cst_63 = arith.constant dense<0.000000e+00> : vector<8x32xf32>
    %157 = tpu.matmul %154, %156, %cst_63 {dimension_numbers = #tpu.dot_dimension_numbers<[1], [0], [0], [1], [0, 0, 1, 1], [], []>} : vector<8x8xbf16>, vector<8x32xbf16>, vector<8x32xf32> -> vector<8x32xf32>
    %158 = arith.addf %131, %157 : vector<8x32xf32>
    %cst_64 = arith.constant dense<0.000000e+00> : vector<8xf32>
    %159 = vector.multi_reduction <add>, %158, %cst_64 [1] : vector<8x32xf32> to vector<8xf32>
    %160 = vector.shape_cast %159 : vector<8xf32> to vector<8x1xf32>
    %cst_65 = arith.constant 3.200000e+01 : f32
    %161 = vector.broadcast %cst_65 : f32 to vector<8x1xf32>
    %162 = arith.divf %160, %161 : vector<8x1xf32>
    %163 = vector.broadcast %162 : vector<8x1xf32> to vector<8x32xf32>
    %164 = arith.subf %158, %163 : vector<8x32xf32>
    %165 = arith.mulf %164, %164 : vector<8x32xf32>
    %cst_66 = arith.constant dense<0.000000e+00> : vector<8xf32>
    %166 = vector.multi_reduction <add>, %165, %cst_66 [1] : vector<8x32xf32> to vector<8xf32>
    %167 = vector.shape_cast %166 : vector<8xf32> to vector<8x1xf32>
    %cst_67 = arith.constant 3.100000e+01 : f32
    %168 = vector.broadcast %cst_67 : f32 to vector<8x1xf32>
    %169 = arith.divf %167, %168 : vector<8x1xf32>
    %170 = math.sqrt %169 : vector<8x1xf32>
    %c0_68 = arith.constant 0 : index
    %c0_69 = arith.constant 0 : index
    %171 = vector.load %arg12[%c0_68, %c0_69] : memref<1x32xf32, #tpu.memory_space<vmem>>, vector<1x32xf32>
    %172 = vector.broadcast %162 : vector<8x1xf32> to vector<8x32xf32>
    %173 = arith.subf %158, %172 : vector<8x32xf32>
    %174 = vector.broadcast %171 : vector<1x32xf32> to vector<8x32xf32>
    %175 = arith.mulf %174, %173 : vector<8x32xf32>
    %cst_70 = arith.constant 9.99999997E-7 : f32
    %176 = vector.broadcast %cst_70 : f32 to vector<8x1xf32>
    %177 = arith.addf %170, %176 : vector<8x1xf32>
    %178 = vector.broadcast %177 : vector<8x1xf32> to vector<8x32xf32>
    %179 = arith.divf %175, %178 : vector<8x32xf32>
    %c0_71 = arith.constant 0 : index
    %c0_72 = arith.constant 0 : index
    %180 = vector.load %arg13[%c0_71, %c0_72] : memref<1x32xf32, #tpu.memory_space<vmem>>, vector<1x32xf32>
    %181 = vector.broadcast %180 : vector<1x32xf32> to vector<8x32xf32>
    %182 = arith.addf %179, %181 : vector<8x32xf32>
    %183 = arith.truncf %182 : vector<8x32xf32> to vector<8x32xbf16>
    %c0_73 = arith.constant 0 : index
    %c0_74 = arith.constant 0 : index
    %184 = vector.load %arg14[%c0_73, %c0_74] : memref<32x64xbf16, #tpu.memory_space<vmem>>, vector<32x64xbf16>
    %cst_75 = arith.constant dense<0.000000e+00> : vector<8x64xf32>
    %185 = tpu.matmul %183, %184, %cst_75 {dimension_numbers = #tpu.dot_dimension_numbers<[1], [0], [0], [1], [0, 0, 1, 1], [], []>} : vector<8x32xbf16>, vector<32x64xbf16>, vector<8x64xf32> -> vector<8x64xf32>
    %c0_76 = arith.constant 0 : index
    %c0_77 = arith.constant 0 : index
    %186 = vector.load %arg15[%c0_76, %c0_77] : memref<1x64xf32, #tpu.memory_space<vmem>>, vector<1x64xf32>
    %187 = vector.broadcast %186 : vector<1x64xf32> to vector<8x64xf32>
    %188 = arith.addf %185, %187 : vector<8x64xf32>
    %cst_78 = arith.constant 0.000000e+00 : f32
    %189 = vector.broadcast %cst_78 : f32 to vector<8x64xf32>
    %190 = arith.maximumf %188, %189 : vector<8x64xf32>
    %191 = arith.truncf %190 : vector<8x64xf32> to vector<8x64xbf16>
    %c0_79 = arith.constant 0 : index
    %c0_80 = arith.constant 0 : index
    %192 = vector.load %arg16[%c0_79, %c0_80] : memref<64x32xbf16, #tpu.memory_space<vmem>>, vector<64x32xbf16>
    %cst_81 = arith.constant dense<0.000000e+00> : vector<8x32xf32>
    %193 = tpu.matmul %191, %192, %cst_81 {dimension_numbers = #tpu.dot_dimension_numbers<[1], [0], [0], [1], [0, 0, 1, 1], [], []>} : vector<8x64xbf16>, vector<64x32xbf16>, vector<8x32xf32> -> vector<8x32xf32>
    %194 = arith.addf %158, %193 : vector<8x32xf32>
    %c0_82 = arith.constant 0 : index
    %c0_83 = arith.constant 0 : index
    %195 = vector.load %arg17[%c0_82, %c0_83] : memref<1x32xf32, #tpu.memory_space<vmem>>, vector<1x32xf32>
    %196 = vector.broadcast %195 : vector<1x32xf32> to vector<8x32xf32>
    %197 = arith.addf %194, %196 : vector<8x32xf32>
    %c0_84 = arith.constant 0 : index
    %c0_85 = arith.constant 0 : index
    %c0_86 = arith.constant 0 : index
    %198 = vector.load %arg18[%c0_84, %c0_85, %c0_86] : memref<1x8x32xf32, #tpu.memory_space<vmem>>, vector<1x8x32xf32>
    %199 = vector.shape_cast %198 : vector<1x8x32xf32> to vector<8x32xf32>
    %200 = vector.shape_cast %197 : vector<8x32xf32> to vector<1x8x32xf32>
    tpu.vector_store %arg18[%c0_84, %c0_85, %c0_86], %200 {strides = array<i32>} : memref<1x8x32xf32, #tpu.memory_space<vmem>>, vector<1x8x32xf32>,
    return
  }
  func.func @transform_0(%arg0: i32) -> (i32, i32, i32) {
    %c0_i32 = arith.constant 0 : i32
    %c0_i32_0 = arith.constant 0 : i32
    %c0_i32_1 = arith.constant 0 : i32
    return %arg0, %c0_i32, %c0_i32_0 : i32, i32, i32
  }
  func.func @transform_1(%arg0: i32) -> (i32, i32) {
    %c0_i32 = arith.constant 0 : i32
    %c0_i32_0 = arith.constant 0 : i32
    %c0_i32_1 = arith.constant 0 : i32
    return %c0_i32, %c0_i32_0 : i32, i32
  }
  func.func @transform_2(%arg0: i32) -> (i32, i32) {
    %c0_i32 = arith.constant 0 : i32
    %c0_i32_0 = arith.constant 0 : i32
    %c0_i32_1 = arith.constant 0 : i32
    return %c0_i32, %c0_i32_0 : i32, i32
  }
  func.func @transform_3(%arg0: i32) -> (i32, i32) {
    %c0_i32 = arith.constant 0 : i32
    %c0_i32_0 = arith.constant 0 : i32
    %c0_i32_1 = arith.constant 0 : i32
    return %c0_i32, %c0_i32_0 : i32, i32
  }
  func.func @transform_4(%arg0: i32) -> (i32, i32) {
    %c0_i32 = arith.constant 0 : i32
    %c0_i32_0 = arith.constant 0 : i32
    %c0_i32_1 = arith.constant 0 : i32
    return %c0_i32, %c0_i32_0 : i32, i32
  }
  func.func @transform_5(%arg0: i32) -> (i32, i32) {
    %c0_i32 = arith.constant 0 : i32
    %c0_i32_0 = arith.constant 0 : i32
    %c0_i32_1 = arith.constant 0 : i32
    return %c0_i32, %c0_i32_0 : i32, i32
  }
  func.func @transform_6(%arg0: i32) -> (i32, i32) {
    %c0_i32 = arith.constant 0 : i32
    %c0_i32_0 = arith.constant 0 : i32
    %c0_i32_1 = arith.constant 0 : i32
    return %c0_i32, %c0_i32_0 : i32, i32
  }
  func.func @transform_7(%arg0: i32) -> (i32, i32) {
    %c0_i32 = arith.constant 0 : i32
    %c0_i32_0 = arith.constant 0 : i32
    %c0_i32_1 = arith.constant 0 : i32
    return %c0_i32, %c0_i32_0 : i32, i32
  }
  func.func @transform_8(%arg0: i32) -> (i32, i32) {
    %c0_i32 = arith.constant 0 : i32
    %c0_i32_0 = arith.constant 0 : i32
    %c0_i32_1 = arith.constant 0 : i32
    return %c0_i32, %c0_i32_0 : i32, i32
  }
  func.func @transform_9(%arg0: i32) -> (i32, i32, i32) {
    %c0_i32 = arith.constant 0 : i32
    %c0_i32_0 = arith.constant 0 : i32
    %c0_i32_1 = arith.constant 0 : i32
    %c0_i32_2 = arith.constant 0 : i32
    return %c0_i32, %c0_i32_0, %c0_i32_1 : i32, i32, i32
  }
  func.func @transform_10(%arg0: i32) -> (i32, i32) {
    %c0_i32 = arith.constant 0 : i32
    %c0_i32_0 = arith.constant 0 : i32
    %c0_i32_1 = arith.constant 0 : i32
    return %c0_i32, %c0_i32_0 : i32, i32
  }
  func.func @transform_11(%arg0: i32) -> (i32, i32) {
    %c0_i32 = arith.constant 0 : i32
    %c0_i32_0 = arith.constant 0 : i32
    %c0_i32_1 = arith.constant 0 : i32
    return %c0_i32, %c0_i32_0 : i32, i32
  }
  func.func @transform_12(%arg0: i32) -> (i32, i32) {
    %c0_i32 = arith.constant 0 : i32
    %c0_i32_0 = arith.constant 0 : i32
    %c0_i32_1 = arith.constant 0 : i32
    return %c0_i32, %c0_i32_0 : i32, i32
  }
  func.func @transform_13(%arg0: i32) -> (i32, i32) {
    %c0_i32 = arith.constant 0 : i32
    %c0_i32_0 = arith.constant 0 : i32
    %c0_i32_1 = arith.constant 0 : i32
    return %c0_i32, %c0_i32_0 : i32, i32
  }
  func.func @transform_14(%arg0: i32) -> (i32, i32) {
    %c0_i32 = arith.constant 0 : i32
    %c0_i32_0 = arith.constant 0 : i32
    %c0_i32_1 = arith.constant 0 : i32
    return %c0_i32, %c0_i32_0 : i32, i32
  }
  func.func @transform_15(%arg0: i32) -> (i32, i32) {
    %c0_i32 = arith.constant 0 : i32
    %c0_i32_0 = arith.constant 0 : i32
    %c0_i32_1 = arith.constant 0 : i32
    return %c0_i32, %c0_i32_0 : i32, i32
  }
  func.func @transform_16(%arg0: i32) -> (i32, i32) {
    %c0_i32 = arith.constant 0 : i32
    %c0_i32_0 = arith.constant 0 : i32
    %c0_i32_1 = arith.constant 0 : i32
    return %c0_i32, %c0_i32_0 : i32, i32
  }
  func.func @transform_17(%arg0: i32) -> (i32, i32, i32) {
    %c0_i32 = arith.constant 0 : i32
    %c0_i32_0 = arith.constant 0 : i32
    %c0_i32_1 = arith.constant 0 : i32
    return %arg0, %c0_i32, %c0_i32_0 : i32, i32, i32
  }
}

</mosaic_0001>

<llo_original>
// kernel: tpu_custom_call.1
$region0: #{tpu_custom_call.1}
  #allocation0 [shape = 'u32[]', space=smem, size = 0x4, offset = 0x4, fixed_abs, tag = 'smem constant byte address 0x4 - core index']
  #allocation1 [shape = 'u32[144,128]{1,0:T(1,128)}', space=vmem, size = 0x12000, scoped, tag = 'internal scratch']
  %s0 = inlined_call_operand.vmem [shape: f32[2,8,32], index: 0, kind: input, shape index: {}]
  %s1 = inlined_call_operand.vmem [shape: f32[1,32], index: 1, kind: input, shape index: {}]
  %s2 = inlined_call_operand.hbm [shape: f32[1,32], index: 2, kind: input, shape index: {}]
  %s3 = inlined_call_operand.vmem [shape: bf16[32,32], index: 3, kind: input, shape index: {}]
  %s4 = inlined_call_operand.hbm [shape: f32[1,32], index: 4, kind: input, shape index: {}]
  %s5 = inlined_call_operand.vmem [shape: bf16[32,32], index: 5, kind: input, shape index: {}]
  %s6 = inlined_call_operand.hbm [shape: f32[1,32], index: 6, kind: input, shape index: {}]
  %s7 = inlined_call_operand.hbm [shape: bf16[32,32], index: 7, kind: input, shape index: {}]
  %s8 = inlined_call_operand.hbm [shape: f32[1,32], index: 8, kind: input, shape index: {}]
  %s9 = inlined_call_operand.vmem [shape: bf16[4,8,32], index: 9, kind: input, shape index: {}]
  %s10 = inlined_call_operand.hbm [shape: f32[1,32], index: 10, kind: input, shape index: {}]
  %s11 = inlined_call_operand.hbm [shape: f32[1,32], index: 11, kind: input, shape index: {}]
  %s12 = inlined_call_operand.hbm [shape: f32[1,32], index: 12, kind: input, shape index: {}]
  %s13 = inlined_call_operand.vmem [shape: bf16[32,64], index: 13, kind: input, shape index: {}]
  %s14 = inlined_call_operand.vmem [shape: f32[1,64], index: 14, kind: input, shape index: {}]
  %s15 = inlined_call_operand.vmem [shape: bf16[64,32], index: 15, kind: input, shape index: {}]
  %s16 = inlined_call_operand.vmem [shape: f32[1,32], index: 16, kind: input, shape index: {}]
  %s17 = inlined_call_operand.hbm [shape: f32[2,8,32], index: 17, kind: output, shape index: {}]
  %s18 = sld [smem:[#allocation0]]
  $region133: #{tpu_custom_call.1} parent=0
    _
  %s20 = ssub.s32 1, %s18
  %s21 = scalar_select 0, %s20, %s18
  $region1: #{tpu_custom_call.1} parent=0
    #allocation2 [shape = 'u8[512]{0}', space=vmem, size = 0x400, scoped, tag = 'input window, operand 2, single buffered']
    #allocation3 [shape = 's32[2]{0}', space=sflag, size = 0x8, scoped, tag = 'scoped memory for tpu_custom_call.1']
    #allocation4 [shape = 's32[2]{0}', space=sflag, size = 0x8, scoped, tag = 'scoped memory for tpu_custom_call.1']
    #allocation5 [shape = 'u8[512]{0}', space=vmem, size = 0x400, scoped, tag = 'input window, operand 4, single buffered']
    #allocation6 [shape = 's32[1]{0}', space=sflag, size = 0x4, scoped, tag = 'scoped memory for tpu_custom_call.1']
    #allocation7 [shape = 'u8[512]{0}', space=vmem, size = 0x400, scoped, tag = 'input window, operand 6, single buffered']
    #allocation8 [shape = 'u8[8192]{0}', space=vmem, size = 0x2000, scoped, tag = 'input window, operand 7, single buffered']
    #allocation9 [shape = 's32[1]{0}', space=sflag, size = 0x4, scoped, tag = 'scoped memory for tpu_custom_call.1']
    #allocation10 [shape = 'u8[512]{0}', space=vmem, size = 0x400, scoped, tag = 'input window, operand 8, single buffered']
    #allocation11 [shape = 'u8[512]{0}', space=vmem, size = 0x400, scoped, tag = 'input window, operand 10, single buffered']
    #allocation12 [shape = 's32[1]{0}', space=sflag, size = 0x4, scoped, tag = 'scoped memory for tpu_custom_call.1']
    #allocation13 [shape = 'u8[512]{0}', space=vmem, size = 0x400, scoped, tag = 'input window, operand 11, single buffered']
    #allocation14 [shape = 'u8[512]{0}', space=vmem, size = 0x400, scoped, tag = 'input window, operand 12, single buffered']
    #allocation15 [shape = 's32[1]{0}', space=sflag, size = 0x4, scoped, tag = 'scoped memory for tpu_custom_call.1']
    #allocation16 [shape = 'u8[8192]{0}', space=vmem, size = 0x2000, scoped, tag = 'output window, operand 0']
    %22 = vsyncpa [#allocation3], 0
    %23 = vsyncpa [#allocation6], 0
    %24 = vsyncpa [#allocation9], 0
    %25 = vsyncpa [#allocation12], 0
    %26 = vsyncpa [#allocation15], 0
    %27 = vsyncpa [#allocation4], 0
    %s28 = scalar_lea.sflag [#allocation4], 1
    %29 = vsyncpa %s28, 0
    loop: start=0, step=1, limit=4
    $region2: #{tpu_custom_call.1} parent=1 // loop_pre_header
      _
    $region3: #{tpu_custom_call.1} parent=1 // loop_header
      %s31 = sphi 0, %s35
      %p32 = scmp.ge.s32.totalorder %s31, 4
      %s41 = sphi 0, %s43
      %s44 = sphi 0, %s41
      %s45 = sphi 0, %s44
      %s61 = sphi 0, %s45
      %s65 = sphi 0, %s65
      %s67 = sphi 0, %s65
      %s68 = sphi 0, %s67
      %s82 = sphi 0, %s68
      %s86 = sphi 0, %s86
      %s88 = sphi 0, %s86
      %s89 = sphi 0, %s88
      %s103 = sphi 0, %s89
      %s107 = sphi 0, %s107
      %s109 = sphi 0, %s107
      %s110 = sphi 0, %s109
      %s124 = sphi 0, %s110
      %s128 = sphi 0, %s128
      %s130 = sphi 0, %s128
      %s131 = sphi 0, %s130
      %s145 = sphi 0, %s131
      %s149 = sphi 0, %s149
      %s151 = sphi 0, %s149
      %s152 = sphi 0, %s151
      %s166 = sphi 0, %s152
      %s170 = sphi 0, %s170
      %s172 = sphi 0, %s170
      %s173 = sphi 0, %s172
      %s187 = sphi 0, %s173
      %s191 = sphi 0, %s191
      %s193 = sphi 0, %s191
      %s194 = sphi 0, %s193
      %s208 = sphi 0, %s194
      %s212 = sphi 0, %s212
      %s214 = sphi 0, %s212
      %s215 = sphi 0, %s214
      %s229 = sphi 0, %s215
      %s233 = sphi 0, %s233
      %s235 = sphi 0, %s233
      %s236 = sphi 0, %s235
      %s250 = sphi 0, %s236
      %s254 = sphi 0, %s254
      %s256 = sphi 0, %s254
      %s257 = sphi 0, %s256
      %s271 = sphi 0, %s257
      %s275 = sphi 0, %s275
      %s277 = sphi 0, %s275
      %s278 = sphi 0, %s277
      %s292 = sphi 0, %s278
      %s296 = sphi 0, %s296
      %s298 = sphi 0, %s296
      %s299 = sphi 0, %s298
      %s313 = sphi 0, %s299
      %s317 = sphi 0, %s317
      %s319 = sphi 0, %s317
      %s320 = sphi 0, %s319
      %s334 = sphi 0, %s320
      %s338 = sphi 0, %s338
      %s340 = sphi 0, %s338
      %s341 = sphi 0, %s340
      %s355 = sphi 0, %s341
      %s359 = sphi 0, %s359
      %s361 = sphi 0, %s359
      %s362 = sphi 0, %s361
      %s376 = sphi 0, %s362
      %s380 = sphi 0, %s380
      %s382 = sphi 0, %s380
      %s383 = sphi 0, %s382
      %s397 = sphi 0, %s383
      %s403 = sphi 0, %s405
      %s406 = sphi 0, %s403
      %s407 = sphi 0, %s406
      %s423 = sphi 0, %s407
    $region4: #{tpu_custom_call.1} parent=1 // loop_header_branch
      %34 = sbr.rel (%p32) target = $region8
    $region5: #{tpu_custom_call.1} parent=1 // loop_body
      %s36 = ssub.s32 %s31, 1
      %s37 = ssub.s32 %s31, 2
      %s38 = sadd.s32 %s31, 1
      %s39 = ssub.s32 %s31, %s38
      %p40 = scmp.eq.s32.totalorder %s39, 0
      %s42 = sadd.s32 %s41, 1
      %s43 = scalar_select %p40, %s41, %s42
      %p46 = pneg %p40
      %p47 = scmp.eq.s32.totalorder %s31, 1
      %p48 = por %p46, %p47
      %p49 = scmp.ne.s32.totalorder %s41, %s44
      %p50 = scmp.eq.s32.totalorder %s31, 0
      %p51 = por %p49, %p50
      %p52 = scmp.ne.s32.totalorder %s41, %s44
      %p53 = scmp.eq.s32.totalorder %s36, 1
      %p54 = por %p52, %p53
      %p55 = scmp.ne.s32.totalorder %s44, %s45
      %p56 = scmp.eq.s32.totalorder %s36, 0
      %p57 = por %p55, %p56
      %p58 = scmp.ne.s32.totalorder %s44, %s45
      %p59 = scmp.eq.s32.totalorder %s37, 1
      %p60 = por %p58, %p59
      %p62 = scmp.ne.s32.totalorder %s45, %s61
      %p63 = scmp.eq.s32.totalorder %s37, 0
      %p64 = por %p62, %p63
      %s66 = sadd.s32 %s65, 1
      %p69 = scmp.eq.s32.totalorder %s31, 1
      %p70 = scmp.ne.s32.totalorder %s65, %s67
      %p71 = scmp.eq.s32.totalorder %s31, 0
      %p72 = por %p70, %p71
      %p73 = scmp.ne.s32.totalorder %s65, %s67
      %p74 = scmp.eq.s32.totalorder %s36, 1
      %p75 = por %p73, %p74
      %p76 = scmp.ne.s32.totalorder %s67, %s68
      %p77 = scmp.eq.s32.totalorder %s36, 0
      %p78 = por %p76, %p77
      %p79 = scmp.ne.s32.totalorder %s67, %s68
      %p80 = scmp.eq.s32.totalorder %s37, 1
      %p81 = por %p79, %p80
      %p83 = scmp.ne.s32.totalorder %s68, %s82
      %p84 = scmp.eq.s32.totalorder %s37, 0
      %p85 = por %p83, %p84
      %s87 = sadd.s32 %s86, 1
      %p90 = scmp.eq.s32.totalorder %s31, 1
      %p91 = scmp.ne.s32.totalorder %s86, %s88
      %p92 = scmp.eq.s32.totalorder %s31, 0
      %p93 = por %p91, %p92
      %p94 = scmp.ne.s32.totalorder %s86, %s88
      %p95 = scmp.eq.s32.totalorder %s36, 1
      %p96 = por %p94, %p95
      %p97 = scmp.ne.s32.totalorder %s88, %s89
      %p98 = scmp.eq.s32.totalorder %s36, 0
      %p99 = por %p97, %p98
      %p100 = scmp.ne.s32.totalorder %s88, %s89
      %p101 = scmp.eq.s32.totalorder %s37, 1
      %p102 = por %p100, %p101
      %p104 = scmp.ne.s32.totalorder %s89, %s103
      %p105 = scmp.eq.s32.totalorder %s37, 0
      %p106 = por %p104, %p105
      %s108 = sadd.s32 %s107, 1
      %p111 = scmp.eq.s32.totalorder %s31, 1
      %p112 = scmp.ne.s32.totalorder %s107, %s109
      %p113 = scmp.eq.s32.totalorder %s31, 0
      %p114 = por %p112, %p113
      %p115 = scmp.ne.s32.totalorder %s107, %s109
      %p116 = scmp.eq.s32.totalorder %s36, 1
      %p117 = por %p115, %p116
      %p118 = scmp.ne.s32.totalorder %s109, %s110
      %p119 = scmp.eq.s32.totalorder %s36, 0
      %p120 = por %p118, %p119
      %p121 = scmp.ne.s32.totalorder %s109, %s110
      %p122 = scmp.eq.s32.totalorder %s37, 1
      %p123 = por %p121, %p122
      %p125 = scmp.ne.s32.totalorder %s110, %s124
      %p126 = scmp.eq.s32.totalorder %s37, 0
      %p127 = por %p125, %p126
      %s129 = sadd.s32 %s128, 1
      %p132 = scmp.eq.s32.totalorder %s31, 1
      %p133 = scmp.ne.s32.totalorder %s128, %s130
      %p134 = scmp.eq.s32.totalorder %s31, 0
      %p135 = por %p133, %p134
      %p136 = scmp.ne.s32.totalorder %s128, %s130
      %p137 = scmp.eq.s32.totalorder %s36, 1
      %p138 = por %p136, %p137
      %p139 = scmp.ne.s32.totalorder %s130, %s131
      %p140 = scmp.eq.s32.totalorder %s36, 0
      %p141 = por %p139, %p140
      %p142 = scmp.ne.s32.totalorder %s130, %s131
      %p143 = scmp.eq.s32.totalorder %s37, 1
      %p144 = por %p142, %p143
      %p146 = scmp.ne.s32.totalorder %s131, %s145
      %p147 = scmp.eq.s32.totalorder %s37, 0
      %p148 = por %p146, %p147
      %s150 = sadd.s32 %s149, 1
      %p153 = scmp.eq.s32.totalorder %s31, 1
      %p154 = scmp.ne.s32.totalorder %s149, %s151
      %p155 = scmp.eq.s32.totalorder %s31, 0
      %p156 = por %p154, %p155
      %p157 = scmp.ne.s32.totalorder %s149, %s151
      %p158 = scmp.eq.s32.totalorder %s36, 1
      %p159 = por %p157, %p158
      %p160 = scmp.ne.s32.totalorder %s151, %s152
      %p161 = scmp.eq.s32.totalorder %s36, 0
      %p162 = por %p160, %p161
      %p163 = scmp.ne.s32.totalorder %s151, %s152
      %p164 = scmp.eq.s32.totalorder %s37, 1
      %p165 = por %p163, %p164
      %p167 = scmp.ne.s32.totalorder %s152, %s166
      %p168 = scmp.eq.s32.totalorder %s37, 0
      %p169 = por %p167, %p168
      %s171 = sadd.s32 %s170, 1
      %p174 = scmp.eq.s32.totalorder %s31, 1
      %p175 = scmp.ne.s32.totalorder %s170, %s172
      %p176 = scmp.eq.s32.totalorder %s31, 0
      %p177 = por %p175, %p176
      %p178 = scmp.ne.s32.totalorder %s170, %s172
      %p179 = scmp.eq.s32.totalorder %s36, 1
      %p180 = por %p178, %p179
      %p181 = scmp.ne.s32.totalorder %s172, %s173
      %p182 = scmp.eq.s32.totalorder %s36, 0
      %p183 = por %p181, %p182
      %p184 = scmp.ne.s32.totalorder %s172, %s173
      %p185 = scmp.eq.s32.totalorder %s37, 1
      %p186 = por %p184, %p185
      %p188 = scmp.ne.s32.totalorder %s173, %s187
      %p189 = scmp.eq.s32.totalorder %s37, 0
      %p190 = por %p188, %p189
      %s192 = sadd.s32 %s191, 1
      %p195 = scmp.eq.s32.totalorder %s31, 1
      %p196 = scmp.ne.s32.totalorder %s191, %s193
      %p197 = scmp.eq.s32.totalorder %s31, 0
      %p198 = por %p196, %p197
      %p199 = scmp.ne.s32.totalorder %s191, %s193
      %p200 = scmp.eq.s32.totalorder %s36, 1
      %p201 = por %p199, %p200
      %p202 = scmp.ne.s32.totalorder %s193, %s194
      %p203 = scmp.eq.s32.totalorder %s36, 0
      %p204 = por %p202, %p203
      %p205 = scmp.ne.s32.totalorder %s193, %s194
      %p206 = scmp.eq.s32.totalorder %s37, 1
      %p207 = por %p205, %p206
      %p209 = scmp.ne.s32.totalorder %s194, %s208
      %p210 = scmp.eq.s32.totalorder %s37, 0
      %p211 = por %p209, %p210
      %s213 = sadd.s32 %s212, 1
      %p216 = scmp.eq.s32.totalorder %s31, 1
      %p217 = scmp.ne.s32.totalorder %s212, %s214
      %p218 = scmp.eq.s32.totalorder %s31, 0
      %p219 = por %p217, %p218
      %p220 = scmp.ne.s32.totalorder %s212, %s214
      %p221 = scmp.eq.s32.totalorder %s36, 1
      %p222 = por %p220, %p221
      %p223 = scmp.ne.s32.totalorder %s214, %s215
      %p224 = scmp.eq.s32.totalorder %s36, 0
      %p225 = por %p223, %p224
      %p226 = scmp.ne.s32.totalorder %s214, %s215
      %p227 = scmp.eq.s32.totalorder %s37, 1
      %p228 = por %p226, %p227
      %p230 = scmp.ne.s32.totalorder %s215, %s229
      %p231 = scmp.eq.s32.totalorder %s37, 0
      %p232 = por %p230, %p231
      %s234 = sadd.s32 %s233, 1
      %p237 = scmp.eq.s32.totalorder %s31, 1
      %p238 = scmp.ne.s32.totalorder %s233, %s235
      %p239 = scmp.eq.s32.totalorder %s31, 0
      %p240 = por %p238, %p239
      %p241 = scmp.ne.s32.totalorder %s233, %s235
      %p242 = scmp.eq.s32.totalorder %s36, 1
      %p243 = por %p241, %p242
      %p244 = scmp.ne.s32.totalorder %s235, %s236
      %p245 = scmp.eq.s32.totalorder %s36, 0
      %p246 = por %p244, %p245
      %p247 = scmp.ne.s32.totalorder %s235, %s236
      %p248 = scmp.eq.s32.totalorder %s37, 1
      %p249 = por %p247, %p248
      %p251 = scmp.ne.s32.totalorder %s236, %s250
      %p252 = scmp.eq.s32.totalorder %s37, 0
      %p253 = por %p251, %p252
      %s255 = sadd.s32 %s254, 1
      %p258 = scmp.eq.s32.totalorder %s31, 1
      %p259 = scmp.ne.s32.totalorder %s254, %s256
      %p260 = scmp.eq.s32.totalorder %s31, 0
      %p261 = por %p259, %p260
      %p262 = scmp.ne.s32.totalorder %s254, %s256
      %p263 = scmp.eq.s32.totalorder %s36, 1
      %p264 = por %p262, %p263
      %p265 = scmp.ne.s32.totalorder %s256, %s257
      %p266 = scmp.eq.s32.totalorder %s36, 0
      %p267 = por %p265, %p266
      %p268 = scmp.ne.s32.totalorder %s256, %s257
      %p269 = scmp.eq.s32.totalorder %s37, 1
      %p270 = por %p268, %p269
      %p272 = scmp.ne.s32.totalorder %s257, %s271
      %p273 = scmp.eq.s32.totalorder %s37, 0
      %p274 = por %p272, %p273
      %s276 = sadd.s32 %s275, 1
      %p279 = scmp.eq.s32.totalorder %s31, 1
      %p280 = scmp.ne.s32.totalorder %s275, %s277
      %p281 = scmp.eq.s32.totalorder %s31, 0
      %p282 = por %p280, %p281
      %p283 = scmp.ne.s32.totalorder %s275, %s277
      %p284 = scmp.eq.s32.totalorder %s36, 1
      %p285 = por %p283, %p284
      %p286 = scmp.ne.s32.totalorder %s277, %s278
      %p287 = scmp.eq.s32.totalorder %s36, 0
      %p288 = por %p286, %p287
      %p289 = scmp.ne.s32.totalorder %s277, %s278
      %p290 = scmp.eq.s32.totalorder %s37, 1
      %p291 = por %p289, %p290
      %p293 = scmp.ne.s32.totalorder %s278, %s292
      %p294 = scmp.eq.s32.totalorder %s37, 0
      %p295 = por %p293, %p294
      %s297 = sadd.s32 %s296, 1
      %p300 = scmp.eq.s32.totalorder %s31, 1
      %p301 = scmp.ne.s32.totalorder %s296, %s298
      %p302 = scmp.eq.s32.totalorder %s31, 0
      %p303 = por %p301, %p302
      %p304 = scmp.ne.s32.totalorder %s296, %s298
      %p305 = scmp.eq.s32.totalorder %s36, 1
      %p306 = por %p304, %p305
      %p307 = scmp.ne.s32.totalorder %s298, %s299
      %p308 = scmp.eq.s32.totalorder %s36, 0
      %p309 = por %p307, %p308
      %p310 = scmp.ne.s32.totalorder %s298, %s299
      %p311 = scmp.eq.s32.totalorder %s37, 1
      %p312 = por %p310, %p311
      %p314 = scmp.ne.s32.totalorder %s299, %s313
      %p315 = scmp.eq.s32.totalorder %s37, 0
      %p316 = por %p314, %p315
      %s318 = sadd.s32 %s317, 1
      %p321 = scmp.eq.s32.totalorder %s31, 1
      %p322 = scmp.ne.s32.totalorder %s317, %s319
      %p323 = scmp.eq.s32.totalorder %s31, 0
      %p324 = por %p322, %p323
      %p325 = scmp.ne.s32.totalorder %s317, %s319
      %p326 = scmp.eq.s32.totalorder %s36, 1
      %p327 = por %p325, %p326
      %p328 = scmp.ne.s32.totalorder %s319, %s320
      %p329 = scmp.eq.s32.totalorder %s36, 0
      %p330 = por %p328, %p329
      %p331 = scmp.ne.s32.totalorder %s319, %s320
      %p332 = scmp.eq.s32.totalorder %s37, 1
      %p333 = por %p331, %p332
      %p335 = scmp.ne.s32.totalorder %s320, %s334
      %p336 = scmp.eq.s32.totalorder %s37, 0
      %p337 = por %p335, %p336
      %s339 = sadd.s32 %s338, 1
      %p342 = scmp.eq.s32.totalorder %s31, 1
      %p343 = scmp.ne.s32.totalorder %s338, %s340
      %p344 = scmp.eq.s32.totalorder %s31, 0
      %p345 = por %p343, %p344
      %p346 = scmp.ne.s32.totalorder %s338, %s340
      %p347 = scmp.eq.s32.totalorder %s36, 1
      %p348 = por %p346, %p347
      %p349 = scmp.ne.s32.totalorder %s340, %s341
      %p350 = scmp.eq.s32.totalorder %s36, 0
      %p351 = por %p349, %p350
      %p352 = scmp.ne.s32.totalorder %s340, %s341
      %p353 = scmp.eq.s32.totalorder %s37, 1
      %p354 = por %p352, %p353
      %p356 = scmp.ne.s32.totalorder %s341, %s355
      %p357 = scmp.eq.s32.totalorder %s37, 0
      %p358 = por %p356, %p357
      %s360 = sadd.s32 %s359, 1
      %p363 = scmp.eq.s32.totalorder %s31, 1
      %p364 = scmp.ne.s32.totalorder %s359, %s361
      %p365 = scmp.eq.s32.totalorder %s31, 0
      %p366 = por %p364, %p365
      %p367 = scmp.ne.s32.totalorder %s359, %s361
      %p368 = scmp.eq.s32.totalorder %s36, 1
      %p369 = por %p367, %p368
      %p370 = scmp.ne.s32.totalorder %s361, %s362
      %p371 = scmp.eq.s32.totalorder %s36, 0
      %p372 = por %p370, %p371
      %p373 = scmp.ne.s32.totalorder %s361, %s362
      %p374 = scmp.eq.s32.totalorder %s37, 1
      %p375 = por %p373, %p374
      %p377 = scmp.ne.s32.totalorder %s362, %s376
      %p378 = scmp.eq.s32.totalorder %s37, 0
      %p379 = por %p377, %p378
      %s381 = sadd.s32 %s380, 1
      %p384 = scmp.eq.s32.totalorder %s31, 1
      %p385 = scmp.ne.s32.totalorder %s380, %s382
      %p386 = scmp.eq.s32.totalorder %s31, 0
      %p387 = por %p385, %p386
      %p388 = scmp.ne.s32.totalorder %s380, %s382
      %p389 = scmp.eq.s32.totalorder %s36, 1
      %p390 = por %p388, %p389
      %p391 = scmp.ne.s32.totalorder %s382, %s383
      %p392 = scmp.eq.s32.totalorder %s36, 0
      %p393 = por %p391, %p392
      %p394 = scmp.ne.s32.totalorder %s382, %s383
      %p395 = scmp.eq.s32.totalorder %s37, 1
      %p396 = por %p394, %p395
      %p398 = scmp.ne.s32.totalorder %s383, %s397
      %p399 = scmp.eq.s32.totalorder %s37, 0
      %p400 = por %p398, %p399
      %s401 = ssub.s32 %s31, %s38
      %p402 = scmp.eq.s32.totalorder %s401, 0
      %s404 = sadd.s32 %s403, 1
      %s405 = scalar_select %p402, %s403, %s404
      %p408 = pneg %p402
      %p409 = scmp.eq.s32.totalorder %s31, 1
      %p410 = por %p408, %p409
      %p411 = scmp.ne.s32.totalorder %s403, %s406
      %p412 = scmp.eq.s32.totalorder %s31, 0
      %p413 = por %p411, %p412
      %p414 = scmp.ne.s32.totalorder %s403, %s406
      %p415 = scmp.eq.s32.totalorder %s36, 1
      %p416 = por %p414, %p415
      %p417 = scmp.ne.s32.totalorder %s406, %s407
      %p418 = scmp.eq.s32.totalorder %s36, 0
      %p419 = por %p417, %p418
      %p420 = scmp.ne.s32.totalorder %s406, %s407
      %p421 = scmp.eq.s32.totalorder %s37, 1
      %p422 = por %p420, %p421
      %p424 = scmp.ne.s32.totalorder %s407, %s423
      %p425 = scmp.eq.s32.totalorder %s37, 0
      %p426 = por %p424, %p425
      %p427 = scmp.le.s32.totalorder 1, %s31
      %p428 = scmp.lt.s32.totalorder %s31, 3
      %p429 = pnand %p427, %p428
      %p430 = pneg %p429
      // Predicated region
      $region9: #{tpu_custom_call.1} parent=5 // pred_check
        _
      $region10: #{tpu_custom_call.1} parent=5 // pred_check_branch
        %432 = sbr.rel (%p429) target = $region12
      $region11: #{tpu_custom_call.1} parent=5 // pred_region
        %s433 = ssub.s32 %s31, 1
        // Predicated region
        $region13: #{tpu_custom_call.1} parent=11 // pred_check
          %p434 = pneg %p78
        $region14: #{tpu_custom_call.1} parent=11 // pred_check_branch
          %436 = sbr.rel (%p434) target = $region16
        $region15: #{tpu_custom_call.1} parent=11 // pred_region
          _
        $region16: #{tpu_custom_call.1} parent=11 // pred_fallthru
          _
        // Predicated region
        $region17: #{tpu_custom_call.1} parent=11 // pred_check
          %p437 = pneg %p99
        $region18: #{tpu_custom_call.1} parent=11 // pred_check_branch
          %439 = sbr.rel (%p437) target = $region20
        $region19: #{tpu_custom_call.1} parent=11 // pred_region
          %s441 = ssub.s32 16, 16
          %442 = vsyncadd [#allocation3], %s441
          %s444 = sshll.u32 [#allocation2], 4
          %s445 = int_to_ptr.vmem [resolvable:$true] %s444
          %447 = dma.hbm_to_vmem [thread:$0]  %s2, 16, %s445, [#allocation3]
        $region20: #{tpu_custom_call.1} parent=11 // pred_fallthru
          _
        // Predicated region
        $region21: #{tpu_custom_call.1} parent=11 // pred_check
          %p448 = pneg %p120
        $region22: #{tpu_custom_call.1} parent=11 // pred_check_branch
          %450 = sbr.rel (%p448) target = $region24
        $region23: #{tpu_custom_call.1} parent=11 // pred_region
          _
        $region24: #{tpu_custom_call.1} parent=11 // pred_fallthru
          _
        // Predicated region
        $region25: #{tpu_custom_call.1} parent=11 // pred_check
          %p451 = pneg %p141
        $region26: #{tpu_custom_call.1} parent=11 // pred_check_branch
          %453 = sbr.rel (%p451) target = $region28
        $region27: #{tpu_custom_call.1} parent=11 // pred_region
          %s455 = ssub.s32 16, 16
          %456 = vsyncadd [#allocation6], %s455
          %s458 = sshll.u32 [#allocation5], 4
          %s459 = int_to_ptr.vmem [resolvable:$true] %s458
          %461 = dma.hbm_to_vmem [thread:$0]  %s4, 16, %s459, [#allocation6]
        $region28: #{tpu_custom_call.1} parent=11 // pred_fallthru
          _
        // Predicated region
        $region29: #{tpu_custom_call.1} parent=11 // pred_check
          %p462 = pneg %p162
        $region30: #{tpu_custom_call.1} parent=11 // pred_check_branch
          %464 = sbr.rel (%p462) target = $region32
        $region31: #{tpu_custom_call.1} parent=11 // pred_region
          _
        $region32: #{tpu_custom_call.1} parent=11 // pred_fallthru
          _
        // Predicated region
        $region33: #{tpu_custom_call.1} parent=11 // pred_check
          %p465 = pneg %p183
        $region34: #{tpu_custom_call.1} parent=11 // pred_check_branch
          %467 = sbr.rel (%p465) target = $region36
        $region35: #{tpu_custom_call.1} parent=11 // pred_region
          %s469 = ssub.s32 16, 16
          %470 = vsyncadd [#allocation6], %s469
          %s472 = sshll.u32 [#allocation7], 4
          %s473 = int_to_ptr.vmem [resolvable:$true] %s472
          %475 = dma.hbm_to_vmem [thread:$0]  %s6, 16, %s473, [#allocation6]
        $region36: #{tpu_custom_call.1} parent=11 // pred_fallthru
          _
        // Predicated region
        $region37: #{tpu_custom_call.1} parent=11 // pred_check
          %p476 = pneg %p204
        $region38: #{tpu_custom_call.1} parent=11 // pred_check_branch
          %478 = sbr.rel (%p476) target = $region40
        $region39: #{tpu_custom_call.1} parent=11 // pred_region
          %s480 = ssub.s32 256, 256
          %481 = vsyncadd [#allocation9], %s480
          %s482 = sshll.u32 [#allocation8], 4
          %s483 = int_to_ptr.vmem [resolvable:$true] %s482
          %488 = dma.hbm_to_vmem [thread:$0]  %s7, 256, %s483, [#allocation9], 64, 64, 4
        $region40: #{tpu_custom_call.1} parent=11 // pred_fallthru
          _
        // Predicated region
        $region41: #{tpu_custom_call.1} parent=11 // pred_check
          %p489 = pneg %p225
        $region42: #{tpu_custom_call.1} parent=11 // pred_check_branch
          %491 = sbr.rel (%p489) target = $region44
        $region43: #{tpu_custom_call.1} parent=11 // pred_region
          %s493 = ssub.s32 16, 16
          %494 = vsyncadd [#allocation9], %s493
          %s496 = sshll.u32 [#allocation10], 4
          %s497 = int_to_ptr.vmem [resolvable:$true] %s496
          %499 = dma.hbm_to_vmem [thread:$0]  %s8, 16, %s497, [#allocation9]
        $region44: #{tpu_custom_call.1} parent=11 // pred_fallthru
          _
        // Predicated region
        $region45: #{tpu_custom_call.1} parent=11 // pred_check
          %p500 = pneg %p246
        $region46: #{tpu_custom_call.1} parent=11 // pred_check_branch
          %502 = sbr.rel (%p500) target = $region48
        $region47: #{tpu_custom_call.1} parent=11 // pred_region
          _
        $region48: #{tpu_custom_call.1} parent=11 // pred_fallthru
          _
        // Predicated region
        $region49: #{tpu_custom_call.1} parent=11 // pred_check
          %p503 = pneg %p267
        $region50: #{tpu_custom_call.1} parent=11 // pred_check_branch
          %505 = sbr.rel (%p503) target = $region52
        $region51: #{tpu_custom_call.1} parent=11 // pred_region
          %s507 = ssub.s32 16, 16
          %508 = vsyncadd [#allocation12], %s507
          %s510 = sshll.u32 [#allocation11], 4
          %s511 = int_to_ptr.vmem [resolvable:$true] %s510
          %513 = dma.hbm_to_vmem [thread:$0]  %s10, 16, %s511, [#allocation12]
        $region52: #{tpu_custom_call.1} parent=11 // pred_fallthru
          _
        // Predicated region
        $region53: #{tpu_custom_call.1} parent=11 // pred_check
          %p514 = pneg %p288
        $region54: #{tpu_custom_call.1} parent=11 // pred_check_branch
          %516 = sbr.rel (%p514) target = $region56
        $region55: #{tpu_custom_call.1} parent=11 // pred_region
          %s518 = ssub.s32 16, 16
          %519 = vsyncadd [#allocation12], %s518
          %s521 = sshll.u32 [#allocation13], 4
          %s522 = int_to_ptr.vmem [resolvable:$true] %s521
          %524 = dma.hbm_to_vmem [thread:$0]  %s11, 16, %s522, [#allocation12]
        $region56: #{tpu_custom_call.1} parent=11 // pred_fallthru
          _
        // Predicated region
        $region57: #{tpu_custom_call.1} parent=11 // pred_check
          %p525 = pneg %p309
        $region58: #{tpu_custom_call.1} parent=11 // pred_check_branch
          %527 = sbr.rel (%p525) target = $region60
        $region59: #{tpu_custom_call.1} parent=11 // pred_region
          %s529 = ssub.s32 16, 16
          %530 = vsyncadd [#allocation15], %s529
          %s532 = sshll.u32 [#allocation14], 4
          %s533 = int_to_ptr.vmem [resolvable:$true] %s532
          %535 = dma.hbm_to_vmem [thread:$0]  %s12, 16, %s533, [#allocation15]
        $region60: #{tpu_custom_call.1} parent=11 // pred_fallthru
          _
        // Predicated region
        $region61: #{tpu_custom_call.1} parent=11 // pred_check
          %p536 = pneg %p330
        $region62: #{tpu_custom_call.1} parent=11 // pred_check_branch
          %538 = sbr.rel (%p536) target = $region64
        $region63: #{tpu_custom_call.1} parent=11 // pred_region
          _
        $region64: #{tpu_custom_call.1} parent=11 // pred_fallthru
          _
        // Predicated region
        $region65: #{tpu_custom_call.1} parent=11 // pred_check
          %p539 = pneg %p351
        $region66: #{tpu_custom_call.1} parent=11 // pred_check_branch
          %541 = sbr.rel (%p539) target = $region68
        $region67: #{tpu_custom_call.1} parent=11 // pred_region
          _
        $region68: #{tpu_custom_call.1} parent=11 // pred_fallthru
          _
        // Predicated region
        $region69: #{tpu_custom_call.1} parent=11 // pred_check
          %p542 = pneg %p372
        $region70: #{tpu_custom_call.1} parent=11 // pred_check_branch
          %544 = sbr.rel (%p542) target = $region72
        $region71: #{tpu_custom_call.1} parent=11 // pred_region
          _
        $region72: #{tpu_custom_call.1} parent=11 // pred_fallthru
          _
        // Predicated region
        $region73: #{tpu_custom_call.1} parent=11 // pred_check
          %p545 = pneg %p393
        $region74: #{tpu_custom_call.1} parent=11 // pred_check_branch
          %547 = sbr.rel (%p545) target = $region76
        $region75: #{tpu_custom_call.1} parent=11 // pred_region
          _
        $region76: #{tpu_custom_call.1} parent=11 // pred_fallthru
          _
      $region12: #{tpu_custom_call.1} parent=5 // pred_fallthru
        _
      %p548 = scmp.lt.s32.totalorder %s31, 2
      // Predicated region
      $region77: #{tpu_custom_call.1} parent=5 // pred_check
        %p549 = pneg %p548
      $region78: #{tpu_custom_call.1} parent=5 // pred_check_branch
        %551 = sbr.rel (%p549) target = $region80
      $region79: #{tpu_custom_call.1} parent=5 // pred_region
        // Predicated region
        $region81: #{tpu_custom_call.1} parent=79 // pred_check
          %p552 = pneg %p51
        $region82: #{tpu_custom_call.1} parent=79 // pred_check_branch
          %554 = sbr.rel (%p552) target = $region84
        $region83: #{tpu_custom_call.1} parent=79 // pred_region
          %p555 = scmp.lt.s32.totalorder %s31, 1
          %s556 = scalar_select %p555, %s31, 1
          %s557 = smul.addr %s556, 8
          %s558 = scalar_lea.vmem %s0, %s557
        $region84: #{tpu_custom_call.1} parent=79 // pred_fallthru
          _
      $region80: #{tpu_custom_call.1} parent=5 // pred_fallthru
        _
      %p559 = scmp.le.s32.totalorder 1, %s31
      %p560 = scmp.lt.s32.totalorder %s31, 3
      %p561 = pnand %p559, %p560
      %p562 = pneg %p561
      // Predicated region
      $region85: #{tpu_custom_call.1} parent=5 // pred_check
        _
      $region86: #{tpu_custom_call.1} parent=5 // pred_check_branch
        %564 = sbr.rel (%p561) target = $region88
      $region87: #{tpu_custom_call.1} parent=5 // pred_region
        %s565 = ssub.s32 %s31, 1
        // Predicated region
        $region89: #{tpu_custom_call.1} parent=87 // pred_check
          %p566 = pneg %p99
        $region90: #{tpu_custom_call.1} parent=87 // pred_check_branch
          %568 = sbr.rel (%p566) target = $region92
        $region91: #{tpu_custom_call.1} parent=87 // pred_region
          %569 = dma.done [#allocation3], 16
        $region92: #{tpu_custom_call.1} parent=87 // pred_fallthru
          _
        // Predicated region
        $region93: #{tpu_custom_call.1} parent=87 // pred_check
          %p570 = pneg %p141
        $region94: #{tpu_custom_call.1} parent=87 // pred_check_branch
          %572 = sbr.rel (%p570) target = $region96
        $region95: #{tpu_custom_call.1} parent=87 // pred_region
          %573 = dma.done [#allocation6], 16
        $region96: #{tpu_custom_call.1} parent=87 // pred_fallthru
          _
        // Predicated region
        $region97: #{tpu_custom_call.1} parent=87 // pred_check
          %p574 = pneg %p183
        $region98: #{tpu_custom_call.1} parent=87 // pred_check_branch
          %576 = sbr.rel (%p574) target = $region100
        $region99: #{tpu_custom_call.1} parent=87 // pred_region
          %577 = dma.done [#allocation6], 16
        $region100: #{tpu_custom_call.1} parent=87 // pred_fallthru
          _
        // Predicated region
        $region101: #{tpu_custom_call.1} parent=87 // pred_check
          %p578 = pneg %p204
        $region102: #{tpu_custom_call.1} parent=87 // pred_check_branch
          %580 = sbr.rel (%p578) target = $region104
        $region103: #{tpu_custom_call.1} parent=87 // pred_region
          %581 = dma.done [#allocation9], 256
        $region104: #{tpu_custom_call.1} parent=87 // pred_fallthru
          _
        // Predicated region
        $region105: #{tpu_custom_call.1} parent=87 // pred_check
          %p582 = pneg %p225
        $region106: #{tpu_custom_call.1} parent=87 // pred_check_branch
          %584 = sbr.rel (%p582) target = $region108
        $region107: #{tpu_custom_call.1} parent=87 // pred_region
          %585 = dma.done [#allocation9], 16
        $region108: #{tpu_custom_call.1} parent=87 // pred_fallthru
          _
        // Predicated region
        $region109: #{tpu_custom_call.1} parent=87 // pred_check
          %p586 = pneg %p267
        $region110: #{tpu_custom_call.1} parent=87 // pred_check_branch
          %588 = sbr.rel (%p586) target = $region112
        $region111: #{tpu_custom_call.1} parent=87 // pred_region
          %589 = dma.done [#allocation12], 16
        $region112: #{tpu_custom_call.1} parent=87 // pred_fallthru
          _
        // Predicated region
        $region113: #{tpu_custom_call.1} parent=87 // pred_check
          %p590 = pneg %p288
        $region114: #{tpu_custom_call.1} parent=87 // pred_check_branch
          %592 = sbr.rel (%p590) target = $region116
        $region115: #{tpu_custom_call.1} parent=87 // pred_region
          %593 = dma.done [#allocation12], 16
        $region116: #{tpu_custom_call.1} parent=87 // pred_fallthru
          _
        // Predicated region
        $region117: #{tpu_custom_call.1} parent=87 // pred_check
          %p594 = pneg %p309
        $region118: #{tpu_custom_call.1} parent=87 // pred_check_branch
          %596 = sbr.rel (%p594) target = $region120
        $region119: #{tpu_custom_call.1} parent=87 // pred_region
          %597 = dma.done [#allocation15], 16
        $region120: #{tpu_custom_call.1} parent=87 // pred_fallthru
          _
        %p598 = scmp.lt.s32.totalorder %s36, 1
        %s599 = scalar_select %p598, %s36, 1
        %s600 = smul.addr %s599, 8
        %s601 = scalar_lea.vmem %s0, %s600
        %p602 = pneg %p57
        %p603 = pneg %p54
        %p604 = pneg %p78
        %p605 = pneg %p75
        %p606 = pneg %p99
        %p607 = pneg %p96
        %p608 = pneg %p120
        %p609 = pneg %p117
        %p610 = pneg %p141
        %p611 = pneg %p138
        %p612 = pneg %p162
        %p613 = pneg %p159
        %p614 = pneg %p183
        %p615 = pneg %p180
        %p616 = pneg %p204
        %p617 = pneg %p201
        %p618 = pneg %p225
        %p619 = pneg %p222
        %p620 = pneg %p246
        %p621 = pneg %p243
        %p622 = pneg %p267
        %p623 = pneg %p264
        %p624 = pneg %p288
        %p625 = pneg %p285
        %p626 = pneg %p309
        %p627 = pneg %p306
        %p628 = pneg %p330
        %p629 = pneg %p327
        %p630 = pneg %p351
        %p631 = pneg %p348
        %p632 = pneg %p372
        %p633 = pneg %p369
        %p634 = pneg %p393
        %p635 = pneg %p390
        %p636 = pneg %p419
        %p637 = pneg %p416
        %s638 = sand.u32 %s406, 1
        %s639 = scalar_lea.sflag [#allocation4], %s638
        %s640 = sand.u32 %s406, 1
        %s641 = smul.addr %s640, 8
        %s642 = scalar_lea.vmem [#allocation16], %s641
        %p643 = scmp.lt.s32.totalorder %s36, 1
        %s644 = scalar_select %p643, %s36, 1
        %s645 = smul.addr %s644, 8
        %s646 = scalar_lea.vmem %s0, %s645
        %v648 = vld [vmem:[%s646] sm:$0xff]
        %vm649 = vcmask 261120
        %v650 = vsel %vm649, %v648, 0.0
        %651 = vadd.xlane.f32.xlu0 %v650
        %v652 = vpop.xlane.xlu0 %651
        %v653 = vrcp.pop 32.0
        %v654 = vmul.f32 %v652, %v653
        %v655 = vsub.f32 %v648, %v654
        %v656 = vmul.f32 %v655, %v655
        %v657 = vsel %vm649, %v656, 0.0
        %658 = vadd.xlane.f32.xlu0 %v657
        %v659 = vpop.xlane.xlu0 %658
        %v660 = vrcp.pop 31.0
        %v661 = vmul.f32 %v659, %v660
        %v662 = vrsqrt.pop %v661
        %v663 = vmul.f32 %v661, %v662
        %vm664 = vcmp.eq.f32.partialorder %v661, inf
        %v665 = vsel %vm664, %v661, %v663
        %vm666 = vcmp.eq.f32.partialorder %v661, 0.0
        %v667 = vand.u32 %v661, 2147483648
        %v668 = vsel %vm666, %v667, %v665
        %v669 = vld [vmem:[%s1] sm:$0x1]
        %v671 = vlaneseq
        %v672 = vshrl.u32 %v671, 7
        %v673 = vsub.s32 0, %v672
        %v674 = vrot.slane %v669, %v673
        %v676 = vmul.f32 %v674, %v655
        %v677 = vadd.f32 %v668, 1e-06
        %v678 = vrcp.pop %v677
        %v679 = vmul.f32 %v676, %v678
        %v680 = vld [vmem:[#allocation2] sm:$0x1]
        %v682 = vlaneseq
        %v683 = vshrl.u32 %v682, 7
        %v684 = vsub.s32 0, %v683
        %v685 = vrot.slane %v680, %v684
        %v687 = vadd.f32 %v679, %v685
        %v688 = vpack.c.bf16 %v687, %v687
        %v689 = vld [vmem:[%s3] sm:$0xf]
        %v690 = vld [vmem:[%s3 + $0x4] sm:$0xf]
        %v691 = vld [vmem:[%s3 + $0x8] sm:$0xf]
        %v692 = vld [vmem:[%s3 + $0xc] sm:$0xf]
        %v693 = vld [vmem:[#allocation5] sm:$0x1]
        %v695 = vlaneseq
        %v696 = vshrl.u32 %v695, 7
        %v697 = vsub.s32 0, %v696
        %v698 = vrot.slane %v693, %v697
        %v704 = vunpack.c.l.b16 %v689
        %v705 = vunpack.c.l.b16 %v690
        %v706 = vunpack.c.l.b16 %v691
        %v707 = vunpack.c.l.b16 %v692
        %v708 = vpack.c.b16 %v705, %v704
        %v709 = vpack.c.b16 %v707, %v706
        %v713 = vsel %vm649, %v688, 0
        %715 = vmatprep.subr.bf16.mxu0 0
        %716 = vmatpush1.bf16.msra.mxu0 %v708
        %717 = vmatprep.subr.bf16.mxu0 0
        %718 = vmatpush1.bf16.msra.mxu0 %v709
        %719 = vmatprep.subr.bf16.mxu0 0
        %720 = vmatpush1.bf16.msra.mxu0 0
        %721 = vmatprep.subr.bf16.mxu0 0
        %722 = vmatpush1.bf16.msra.mxu0 0
        %723 = vmatprep.subr.bf16.mxu0 0
        %724 = vmatpush1.bf16.msra.mxu0 0
        %725 = vmatprep.subr.bf16.mxu0 0
        %726 = vmatpush1.bf16.msra.mxu0 0
        %727 = vmatprep.subr.bf16.mxu0 0
        %728 = vmatpush1.bf16.msra.mxu0 0
        %729 = vmatprep.subr.bf16.mxu0 0
        %730 = vmatpush1.bf16.msra.mxu0 0
        %731 = vmatprep.subr.bf16.mxu0 0
        %732 = vmatpush1.bf16.msra.mxu0 0
        %733 = vmatprep.subr.bf16.mxu0 0
        %734 = vmatpush1.bf16.msra.mxu0 0
        %735 = vmatprep.subr.bf16.mxu0 0
        %736 = vmatpush1.bf16.msra.mxu0 0
        %737 = vmatprep.subr.bf16.mxu0 0
        %738 = vmatpush1.bf16.msra.mxu0 0
        %739 = vmatprep.subr.bf16.mxu0 0
        %740 = vmatpush1.bf16.msra.mxu0 0
        %741 = vmatprep.subr.bf16.mxu0 0
        %742 = vmatpush1.bf16.msra.mxu0 0
        %743 = vmatprep.subr.bf16.mxu0 0
        %744 = vmatpush1.bf16.msra.mxu0 0
        %745 = vmatprep.subr.bf16.mxu0 0
        %746 = vmatpush1.bf16.msra.mxu0 0
        %747 = vmatprep.mubr.bf16.mxu0 0
        %748 = vmatmul.mubr.bf16.gmra.mrb[0].mxu0 %v713
        %v749 = vpop.f32.mrb[0].mxu0
        %v750 = vadd.f32 %v698, %v749
        %v751 = vpop.f32.mrb[0].mxu0
        %v752 = vpop.f32.mrb[0].mxu0
        %v753 = vpop.f32.mrb[0].mxu0
        %754 = vdwg.mxu0
        %v755 = vld [vmem:[%s5] sm:$0xf]
        %v756 = vld [vmem:[%s5 + $0x4] sm:$0xf]
        %v757 = vld [vmem:[%s5 + $0x8] sm:$0xf]
        %v758 = vld [vmem:[%s5 + $0xc] sm:$0xf]
        %v759 = vld [vmem:[#allocation7] sm:$0x1]
        %v761 = vlaneseq
        %v762 = vshrl.u32 %v761, 7
        %v763 = vsub.s32 0, %v762
        %v764 = vrot.slane %v759, %v763
        %v770 = vunpack.c.l.b16 %v755
        %v771 = vunpack.c.l.b16 %v756
        %v772 = vunpack.c.l.b16 %v757
        %v773 = vunpack.c.l.b16 %v758
        %v774 = vpack.c.b16 %v771, %v770
        %v775 = vpack.c.b16 %v773, %v772
        %778 = vmatprep.subr.bf16.mxu0 0
        %779 = vmatpush1.bf16.msra.mxu0 %v774
        %780 = vmatprep.subr.bf16.mxu0 0
        %781 = vmatpush1.bf16.msra.mxu0 %v775
        %782 = vmatprep.subr.bf16.mxu0 0
        %783 = vmatpush1.bf16.msra.mxu0 0
        %784 = vmatprep.subr.bf16.mxu0 0
        %785 = vmatpush1.bf16.msra.mxu0 0
        %786 = vmatprep.subr.bf16.mxu0 0
        %787 = vmatpush1.bf16.msra.mxu0 0
        %788 = vmatprep.subr.bf16.mxu0 0
        %789 = vmatpush1.bf16.msra.mxu0 0
        %790 = vmatprep.subr.bf16.mxu0 0
        %791 = vmatpush1.bf16.msra.mxu0 0
        %792 = vmatprep.subr.bf16.mxu0 0
        %793 = vmatpush1.bf16.msra.mxu0 0
        %794 = vmatprep.subr.bf16.mxu0 0
        %795 = vmatpush1.bf16.msra.mxu0 0
        %796 = vmatprep.subr.bf16.mxu0 0
        %797 = vmatpush1.bf16.msra.mxu0 0
        %798 = vmatprep.subr.bf16.mxu0 0
        %799 = vmatpush1.bf16.msra.mxu0 0
        %800 = vmatprep.subr.bf16.mxu0 0
        %801 = vmatpush1.bf16.msra.mxu0 0
        %802 = vmatprep.subr.bf16.mxu0 0
        %803 = vmatpush1.bf16.msra.mxu0 0
        %804 = vmatprep.subr.bf16.mxu0 0
        %805 = vmatpush1.bf16.msra.mxu0 0
        %806 = vmatprep.subr.bf16.mxu0 0
        %807 = vmatpush1.bf16.msra.mxu0 0
        %808 = vmatprep.subr.bf16.mxu0 0
        %809 = vmatpush1.bf16.msra.mxu0 0
        %810 = vmatprep.mubr.bf16.mxu0 0
        %811 = vmatmul.mubr.bf16.gmra.mrb[0].mxu0 %v713
        %v812 = vpop.f32.mrb[0].mxu0
        %v813 = vadd.f32 %v764, %v812
        %v814 = vpop.f32.mrb[0].mxu0
        %v815 = vpop.f32.mrb[0].mxu0
        %v816 = vpop.f32.mrb[0].mxu0
        %817 = vdwg.mxu0
        %v818 = vld [vmem:[#allocation8] sm:$0xf]
        %v819 = vld [vmem:[#allocation8 + $0x4] sm:$0xf]
        %v820 = vld [vmem:[#allocation8 + $0x8] sm:$0xf]
        %v821 = vld [vmem:[#allocation8 + $0xc] sm:$0xf]
        %v822 = vld [vmem:[#allocation10] sm:$0x1]
        %v824 = vlaneseq
        %v825 = vshrl.u32 %v824, 7
        %v826 = vsub.s32 0, %v825
        %v827 = vrot.slane %v822, %v826
        %v833 = vunpack.c.l.b16 %v818
        %v834 = vunpack.c.l.b16 %v819
        %v835 = vunpack.c.l.b16 %v820
        %v836 = vunpack.c.l.b16 %v821
        %v837 = vpack.c.b16 %v834, %v833
        %v838 = vpack.c.b16 %v836, %v835
        %841 = vmatprep.subr.bf16.mxu0 0
        %842 = vmatpush1.bf16.msra.mxu0 %v837
        %843 = vmatprep.subr.bf16.mxu0 0
        %844 = vmatpush1.bf16.msra.mxu0 %v838
        %845 = vmatprep.subr.bf16.mxu0 0
        %846 = vmatpush1.bf16.msra.mxu0 0
        %847 = vmatprep.subr.bf16.mxu0 0
        %848 = vmatpush1.bf16.msra.mxu0 0
        %849 = vmatprep.subr.bf16.mxu0 0
        %850 = vmatpush1.bf16.msra.mxu0 0
        %851 = vmatprep.subr.bf16.mxu0 0
        %852 = vmatpush1.bf16.msra.mxu0 0
        %853 = vmatprep.subr.bf16.mxu0 0
        %854 = vmatpush1.bf16.msra.mxu0 0
        %855 = vmatprep.subr.bf16.mxu0 0
        %856 = vmatpush1.bf16.msra.mxu0 0
        %857 = vmatprep.subr.bf16.mxu0 0
        %858 = vmatpush1.bf16.msra.mxu0 0
        %859 = vmatprep.subr.bf16.mxu0 0
        %860 = vmatpush1.bf16.msra.mxu0 0
        %861 = vmatprep.subr.bf16.mxu0 0
        %862 = vmatpush1.bf16.msra.mxu0 0
        %863 = vmatprep.subr.bf16.mxu0 0
        %864 = vmatpush1.bf16.msra.mxu0 0
        %865 = vmatprep.subr.bf16.mxu0 0
        %866 = vmatpush1.bf16.msra.mxu0 0
        %867 = vmatprep.subr.bf16.mxu0 0
        %868 = vmatpush1.bf16.msra.mxu0 0
        %869 = vmatprep.subr.bf16.mxu0 0
        %870 = vmatpush1.bf16.msra.mxu0 0
        %871 = vmatprep.subr.bf16.mxu0 0
        %872 = vmatpush1.bf16.msra.mxu0 0
        %873 = vmatprep.mubr.bf16.mxu0 0
        %874 = vmatmul.mubr.bf16.gmra.mrb[0].mxu0 %v713
        %v875 = vpop.f32.mrb[0].mxu0
        %v876 = vadd.f32 %v827, %v875
        %v877 = vpop.f32.mrb[0].mxu0
        %v878 = vpop.f32.mrb[0].mxu0
        %v879 = vpop.f32.mrb[0].mxu0
        %880 = vdwg.mxu0
        %v881 = vmul.f32 %v750, 0.35355338
        %v882 = vpack.c.bf16 %v881, %v881
        %v883 = vpack.c.bf16 %v813, %v813
        %v884 = vpack.c.bf16 %v876, %v876
        %v885 = vlaneseq
        %v886 = vand.u32 %v885, 127
        %v887 = vld [vmem:[#allocation11] sm:$0x1]
        %v889 = vlaneseq
        %v890 = vshrl.u32 %v889, 7
        %v891 = vsub.s32 0, %v890
        %v892 = vrot.slane %v887, %v891
        %v894 = vadd.f32 %v648, %v892
        %vm895 = vcmask 64512
        %v897 = vsel %vm895, %v882, 0
        %v900 = vsel %vm895, %v883, 0
        %902 = vmatprep.subr.bf16.mxu0 0
        %903 = vmatpush1.bf16.xpose.msra.mxu0 %v900
        %904 = vmatprep.subr.bf16.mxu0 0
        %905 = vmatpush1.bf16.xpose.msra.mxu0 0
        %906 = vmatprep.subr.bf16.mxu0 0
        %907 = vmatpush1.bf16.xpose.msra.mxu0 0
        %908 = vmatprep.subr.bf16.mxu0 0
        %909 = vmatpush1.bf16.xpose.msra.mxu0 0
        %910 = vmatprep.subr.bf16.mxu0 0
        %911 = vmatpush1.bf16.xpose.msra.mxu0 0
        %912 = vmatprep.subr.bf16.mxu0 0
        %913 = vmatpush1.bf16.xpose.msra.mxu0 0
        %914 = vmatprep.subr.bf16.mxu0 0
        %915 = vmatpush1.bf16.xpose.msra.mxu0 0
        %916 = vmatprep.subr.bf16.mxu0 0
        %917 = vmatpush1.bf16.xpose.msra.mxu0 0
        %918 = vmatprep.subr.bf16.mxu0 0
        %919 = vmatpush1.bf16.xpose.msra.mxu0 0
        %920 = vmatprep.subr.bf16.mxu0 0
        %921 = vmatpush1.bf16.xpose.msra.mxu0 0
        %922 = vmatprep.subr.bf16.mxu0 0
        %923 = vmatpush1.bf16.xpose.msra.mxu0 0
        %924 = vmatprep.subr.bf16.mxu0 0
        %925 = vmatpush1.bf16.xpose.msra.mxu0 0
        %926 = vmatprep.subr.bf16.mxu0 0
        %927 = vmatpush1.bf16.xpose.msra.mxu0 0
        %928 = vmatprep.subr.bf16.mxu0 0
        %929 = vmatpush1.bf16.xpose.msra.mxu0 0
        %930 = vmatprep.subr.bf16.mxu0 0
        %931 = vmatpush1.bf16.xpose.msra.mxu0 0
        %932 = vmatprep.subr.bf16.mxu0 0
        %933 = vmatpush1.bf16.xpose.msra.mxu0 0
        %934 = vmatprep.mubr.bf16.mxu0 0
        %935 = vmatmul.mubr.bf16.gmra.mrb[0].mxu0 %v897
        %v936 = vpop.f32.mrb[0].mxu0
        %v937 = vadd.f32 0.0, %v936
        %v938 = vpop.f32.mrb[0].mxu0
        %v939 = vpop.f32.mrb[0].mxu0
        %v940 = vpop.f32.mrb[0].mxu0
        %941 = vdwg.mxu0
        %vm942 = vcmp.eq.s32.totalorder %v886, 0
        %v943 = vsel %vm942, 1, 0
        %vm944 = vcmp.eq.s32.totalorder %v943, 1
        %v945 = vsel %vm944, -1e+09, %v937
        %v946 = vsel %vm895, %v945, -inf
        %947 = vmax.xlane.f32.xlu0 %v946
        %v948 = vpop.xlane.xlu0 %947
        %v949 = vsub.f32 %v945, %v948
        %v950 = vmul.f32 %v949, 1.442695
        %v951 = vpow.pop %v950
        %v952 = vsel %vm895, %v951, 0.0
        %953 = vadd.xlane.f32.xlu0 %v952
        %v954 = vpop.xlane.xlu0 %953
        %v955 = vrcp.pop %v954
        %v956 = vmul.f32 %v951, %v955
        %v957 = vpack.c.bf16 %v956, %v956
        %v959 = vsel %vm895, %v957, 0
        %vm961 = vcmask 1043456
        %v963 = vsel %vm961, %v884, 0
        %965 = vmatprep.subr.bf16.mxu0 0
        %966 = vmatpush1.bf16.msra.mxu0 %v963
        %967 = vmatprep.subr.bf16.mxu0 0
        %968 = vmatpush1.bf16.msra.mxu0 0
        %969 = vmatprep.subr.bf16.mxu0 0
        %970 = vmatpush1.bf16.msra.mxu0 0
        %971 = vmatprep.subr.bf16.mxu0 0
        %972 = vmatpush1.bf16.msra.mxu0 0
        %973 = vmatprep.subr.bf16.mxu0 0
        %974 = vmatpush1.bf16.msra.mxu0 0
        %975 = vmatprep.subr.bf16.mxu0 0
        %976 = vmatpush1.bf16.msra.mxu0 0
        %977 = vmatprep.subr.bf16.mxu0 0
        %978 = vmatpush1.bf16.msra.mxu0 0
        %979 = vmatprep.subr.bf16.mxu0 0
        %980 = vmatpush1.bf16.msra.mxu0 0
        %981 = vmatprep.subr.bf16.mxu0 0
        %982 = vmatpush1.bf16.msra.mxu0 0
        %983 = vmatprep.subr.bf16.mxu0 0
        %984 = vmatpush1.bf16.msra.mxu0 0
        %985 = vmatprep.subr.bf16.mxu0 0
        %986 = vmatpush1.bf16.msra.mxu0 0
        %987 = vmatprep.subr.bf16.mxu0 0
        %988 = vmatpush1.bf16.msra.mxu0 0
        %989 = vmatprep.subr.bf16.mxu0 0
        %990 = vmatpush1.bf16.msra.mxu0 0
        %991 = vmatprep.subr.bf16.mxu0 0
        %992 = vmatpush1.bf16.msra.mxu0 0
        %993 = vmatprep.subr.bf16.mxu0 0
        %994 = vmatpush1.bf16.msra.mxu0 0
        %995 = vmatprep.subr.bf16.mxu0 0
        %996 = vmatpush1.bf16.msra.mxu0 0
        %997 = vmatprep.mubr.bf16.mxu0 0
        %998 = vmatmul.mubr.bf16.gmra.mrb[0].mxu0 %v959
        %v999 = vpop.f32.mrb[0].mxu0
        %v1000 = vadd.f32 0.0, %v999
        %v1001 = vpop.f32.mrb[0].mxu0
        %v1002 = vpop.f32.mrb[0].mxu0
        %v1003 = vpop.f32.mrb[0].mxu0
        %1004 = vdwg.mxu0
        %v1005 = vpack.c.bf16 %v1000, %v1000
        %v1006 = vld [vmem:[%s9] sm:$0xf]
        %v1008 = vsel %vm895, %v1005, 0
        %v1011 = vsel %vm961, %v1006, 0
        %1013 = vmatprep.subr.bf16.mxu0 0
        %1014 = vmatpush1.bf16.msra.mxu0 %v1011
        %1015 = vmatprep.subr.bf16.mxu0 0
        %1016 = vmatpush1.bf16.msra.mxu0 0
        %1017 = vmatprep.subr.bf16.mxu0 0
        %1018 = vmatpush1.bf16.msra.mxu0 0
        %1019 = vmatprep.subr.bf16.mxu0 0
        %1020 = vmatpush1.bf16.msra.mxu0 0
        %1021 = vmatprep.subr.bf16.mxu0 0
        %1022 = vmatpush1.bf16.msra.mxu0 0
        %1023 = vmatprep.subr.bf16.mxu0 0
        %1024 = vmatpush1.bf16.msra.mxu0 0
        %1025 = vmatprep.subr.bf16.mxu0 0
        %1026 = vmatpush1.bf16.msra.mxu0 0
        %1027 = vmatprep.subr.bf16.mxu0 0
        %1028 = vmatpush1.bf16.msra.mxu0 0
        %1029 = vmatprep.subr.bf16.mxu0 0
        %1030 = vmatpush1.bf16.msra.mxu0 0
        %1031 = vmatprep.subr.bf16.mxu0 0
        %1032 = vmatpush1.bf16.msra.mxu0 0
        %1033 = vmatprep.subr.bf16.mxu0 0
        %1034 = vmatpush1.bf16.msra.mxu0 0
        %1035 = vmatprep.subr.bf16.mxu0 0
        %1036 = vmatpush1.bf16.msra.mxu0 0
        %1037 = vmatprep.subr.bf16.mxu0 0
        %1038 = vmatpush1.bf16.msra.mxu0 0
        %1039 = vmatprep.subr.bf16.mxu0 0
        %1040 = vmatpush1.bf16.msra.mxu0 0
        %1041 = vmatprep.subr.bf16.mxu0 0
        %1042 = vmatpush1.bf16.msra.mxu0 0
        %1043 = vmatprep.subr.bf16.mxu0 0
        %1044 = vmatpush1.bf16.msra.mxu0 0
        %1045 = vmatprep.mubr.bf16.mxu0 0
        %1046 = vmatmul.mubr.bf16.gmra.mrb[0].mxu0 %v1008
        %v1047 = vpop.f32.mrb[0].mxu0
        %v1048 = vadd.f32 0.0, %v1047
        %v1049 = vpop.f32.mrb[0].mxu0
        %v1050 = vpop.f32.mrb[0].mxu0
        %v1051 = vpop.f32.mrb[0].mxu0
        %1052 = vdwg.mxu0
        %v1053 = vadd.f32 %v894, %v1048
        %1055 = vrot.lane.b32.xlu0 %v882, 120
        %v1056 = vpop.permute.xlu0 %1055
        %1058 = vrot.lane.b32.xlu0 %v883, 120
        %v1059 = vpop.permute.xlu0 %1058
        %v1061 = vsel %vm895, %v1056, 0
        %v1064 = vsel %vm895, %v1059, 0
        %1066 = vmatprep.subr.bf16.mxu0 0
        %1067 = vmatpush1.bf16.xpose.msra.mxu0 %v1064
        %1068 = vmatprep.subr.bf16.mxu0 0
        %1069 = vmatpush1.bf16.xpose.msra.mxu0 0
        %1070 = vmatprep.subr.bf16.mxu0 0
        %1071 = vmatpush1.bf16.xpose.msra.mxu0 0
        %1072 = vmatprep.subr.bf16.mxu0 0
        %1073 = vmatpush1.bf16.xpose.msra.mxu0 0
        %1074 = vmatprep.subr.bf16.mxu0 0
        %1075 = vmatpush1.bf16.xpose.msra.mxu0 0
        %1076 = vmatprep.subr.bf16.mxu0 0
        %1077 = vmatpush1.bf16.xpose.msra.mxu0 0
        %1078 = vmatprep.subr.bf16.mxu0 0
        %1079 = vmatpush1.bf16.xpose.msra.mxu0 0
        %1080 = vmatprep.subr.bf16.mxu0 0
        %1081 = vmatpush1.bf16.xpose.msra.mxu0 0
        %1082 = vmatprep.subr.bf16.mxu0 0
        %1083 = vmatpush1.bf16.xpose.msra.mxu0 0
        %1084 = vmatprep.subr.bf16.mxu0 0
        %1085 = vmatpush1.bf16.xpose.msra.mxu0 0
        %1086 = vmatprep.subr.bf16.mxu0 0
        %1087 = vmatpush1.bf16.xpose.msra.mxu0 0
        %1088 = vmatprep.subr.bf16.mxu0 0
        %1089 = vmatpush1.bf16.xpose.msra.mxu0 0
        %1090 = vmatprep.subr.bf16.mxu0 0
        %1091 = vmatpush1.bf16.xpose.msra.mxu0 0
        %1092 = vmatprep.subr.bf16.mxu0 0
        %1093 = vmatpush1.bf16.xpose.msra.mxu0 0
        %1094 = vmatprep.subr.bf16.mxu0 0
        %1095 = vmatpush1.bf16.xpose.msra.mxu0 0
        %1096 = vmatprep.subr.bf16.mxu0 0
        %1097 = vmatpush1.bf16.xpose.msra.mxu0 0
        %1098 = vmatprep.mubr.bf16.mxu0 0
        %1099 = vmatmul.mubr.bf16.gmra.mrb[0].mxu0 %v1061
        %v1100 = vpop.f32.mrb[0].mxu0
        %v1101 = vadd.f32 0.0, %v1100
        %v1102 = vpop.f32.mrb[0].mxu0
        %v1103 = vpop.f32.mrb[0].mxu0
        %v1104 = vpop.f32.mrb[0].mxu0
        %1105 = vdwg.mxu0
        %v1106 = vsel %vm944, -1e+09, %v1101
        %v1107 = vsel %vm895, %v1106, -inf
        %1108 = vmax.xlane.f32.xlu0 %v1107
        %v1109 = vpop.xlane.xlu0 %1108
        %v1110 = vsub.f32 %v1106, %v1109
        %v1111 = vmul.f32 %v1110, 1.442695
        %v1112 = vpow.pop %v1111
        %v1113 = vsel %vm895, %v1112, 0.0
        %1114 = vadd.xlane.f32.xlu0 %v1113
        %v1115 = vpop.xlane.xlu0 %1114
        %v1116 = vrcp.pop %v1115
        %v1117 = vmul.f32 %v1112, %v1116
        %v1118 = vpack.c.bf16 %v1117, %v1117
        %1120 = vrot.lane.b32.xlu0 %v884, 120
        %v1121 = vpop.permute.xlu0 %1120
        %v1123 = vsel %vm895, %v1118, 0
        %v1126 = vsel %vm961, %v1121, 0
        %1128 = vmatprep.subr.bf16.mxu0 0
        %1129 = vmatpush1.bf16.msra.mxu0 %v1126
        %1130 = vmatprep.subr.bf16.mxu0 0
        %1131 = vmatpush1.bf16.msra.mxu0 0
        %1132 = vmatprep.subr.bf16.mxu0 0
        %1133 = vmatpush1.bf16.msra.mxu0 0
        %1134 = vmatprep.subr.bf16.mxu0 0
        %1135 = vmatpush1.bf16.msra.mxu0 0
        %1136 = vmatprep.subr.bf16.mxu0 0
        %1137 = vmatpush1.bf16.msra.mxu0 0
        %1138 = vmatprep.subr.bf16.mxu0 0
        %1139 = vmatpush1.bf16.msra.mxu0 0
        %1140 = vmatprep.subr.bf16.mxu0 0
        %1141 = vmatpush1.bf16.msra.mxu0 0
        %1142 = vmatprep.subr.bf16.mxu0 0
        %1143 = vmatpush1.bf16.msra.mxu0 0
        %1144 = vmatprep.subr.bf16.mxu0 0
        %1145 = vmatpush1.bf16.msra.mxu0 0
        %1146 = vmatprep.subr.bf16.mxu0 0
        %1147 = vmatpush1.bf16.msra.mxu0 0
        %1148 = vmatprep.subr.bf16.mxu0 0
        %1149 = vmatpush1.bf16.msra.mxu0 0
        %1150 = vmatprep.subr.bf16.mxu0 0
        %1151 = vmatpush1.bf16.msra.mxu0 0
        %1152 = vmatprep.subr.bf16.mxu0 0
        %1153 = vmatpush1.bf16.msra.mxu0 0
        %1154 = vmatprep.subr.bf16.mxu0 0
        %1155 = vmatpush1.bf16.msra.mxu0 0
        %1156 = vmatprep.subr.bf16.mxu0 0
        %1157 = vmatpush1.bf16.msra.mxu0 0
        %1158 = vmatprep.subr.bf16.mxu0 0
        %1159 = vmatpush1.bf16.msra.mxu0 0
        %1160 = vmatprep.mubr.bf16.mxu0 0
        %1161 = vmatmul.mubr.bf16.gmra.mrb[0].mxu0 %v1123
        %v1162 = vpop.f32.mrb[0].mxu0
        %v1163 = vadd.f32 0.0, %v1162
        %v1164 = vpop.f32.mrb[0].mxu0
        %v1165 = vpop.f32.mrb[0].mxu0
        %v1166 = vpop.f32.mrb[0].mxu0
        %1167 = vdwg.mxu0
        %v1168 = vpack.c.bf16 %v1163, %v1163
        %s1169 = scalar_lea.vmem %s9, 4
        %v1170 = vld [vmem:[%s1169] sm:$0xf]
        %v1172 = vsel %vm895, %v1168, 0
        %v1175 = vsel %vm961, %v1170, 0
        %1177 = vmatprep.subr.bf16.mxu0 0
        %1178 = vmatpush1.bf16.msra.mxu0 %v1175
        %1179 = vmatprep.subr.bf16.mxu0 0
        %1180 = vmatpush1.bf16.msra.mxu0 0
        %1181 = vmatprep.subr.bf16.mxu0 0
        %1182 = vmatpush1.bf16.msra.mxu0 0
        %1183 = vmatprep.subr.bf16.mxu0 0
        %1184 = vmatpush1.bf16.msra.mxu0 0
        %1185 = vmatprep.subr.bf16.mxu0 0
        %1186 = vmatpush1.bf16.msra.mxu0 0
        %1187 = vmatprep.subr.bf16.mxu0 0
        %1188 = vmatpush1.bf16.msra.mxu0 0
        %1189 = vmatprep.subr.bf16.mxu0 0
        %1190 = vmatpush1.bf16.msra.mxu0 0
        %1191 = vmatprep.subr.bf16.mxu0 0
        %1192 = vmatpush1.bf16.msra.mxu0 0
        %1193 = vmatprep.subr.bf16.mxu0 0
        %1194 = vmatpush1.bf16.msra.mxu0 0
        %1195 = vmatprep.subr.bf16.mxu0 0
        %1196 = vmatpush1.bf16.msra.mxu0 0
        %1197 = vmatprep.subr.bf16.mxu0 0
        %1198 = vmatpush1.bf16.msra.mxu0 0
        %1199 = vmatprep.subr.bf16.mxu0 0
        %1200 = vmatpush1.bf16.msra.mxu0 0
        %1201 = vmatprep.subr.bf16.mxu0 0
        %1202 = vmatpush1.bf16.msra.mxu0 0
        %1203 = vmatprep.subr.bf16.mxu0 0
        %1204 = vmatpush1.bf16.msra.mxu0 0
        %1205 = vmatprep.subr.bf16.mxu0 0
        %1206 = vmatpush1.bf16.msra.mxu0 0
        %1207 = vmatprep.subr.bf16.mxu0 0
        %1208 = vmatpush1.bf16.msra.mxu0 0
        %1209 = vmatprep.mubr.bf16.mxu0 0
        %1210 = vmatmul.mubr.bf16.gmra.mrb[0].mxu0 %v1172
        %v1211 = vpop.f32.mrb[0].mxu0
        %v1212 = vadd.f32 0.0, %v1211
        %v1213 = vpop.f32.mrb[0].mxu0
        %v1214 = vpop.f32.mrb[0].mxu0
        %v1215 = vpop.f32.mrb[0].mxu0
        %1216 = vdwg.mxu0
        %v1217 = vadd.f32 %v1053, %v1212
        %1218 = vrot.lane.b32.xlu0 %v882, 112
        %v1219 = vpop.permute.xlu0 %1218
        %1220 = vrot.lane.b32.xlu0 %v883, 112
        %v1221 = vpop.permute.xlu0 %1220
        %v1223 = vsel %vm895, %v1219, 0
        %v1226 = vsel %vm895, %v1221, 0
        %1228 = vmatprep.subr.bf16.mxu0 0
        %1229 = vmatpush1.bf16.xpose.msra.mxu0 %v1226
        %1230 = vmatprep.subr.bf16.mxu0 0
        %1231 = vmatpush1.bf16.xpose.msra.mxu0 0
        %1232 = vmatprep.subr.bf16.mxu0 0
        %1233 = vmatpush1.bf16.xpose.msra.mxu0 0
        %1234 = vmatprep.subr.bf16.mxu0 0
        %1235 = vmatpush1.bf16.xpose.msra.mxu0 0
        %1236 = vmatprep.subr.bf16.mxu0 0
        %1237 = vmatpush1.bf16.xpose.msra.mxu0 0
        %1238 = vmatprep.subr.bf16.mxu0 0
        %1239 = vmatpush1.bf16.xpose.msra.mxu0 0
        %1240 = vmatprep.subr.bf16.mxu0 0
        %1241 = vmatpush1.bf16.xpose.msra.mxu0 0
        %1242 = vmatprep.subr.bf16.mxu0 0
        %1243 = vmatpush1.bf16.xpose.msra.mxu0 0
        %1244 = vmatprep.subr.bf16.mxu0 0
        %1245 = vmatpush1.bf16.xpose.msra.mxu0 0
        %1246 = vmatprep.subr.bf16.mxu0 0
        %1247 = vmatpush1.bf16.xpose.msra.mxu0 0
        %1248 = vmatprep.subr.bf16.mxu0 0
        %1249 = vmatpush1.bf16.xpose.msra.mxu0 0
        %1250 = vmatprep.subr.bf16.mxu0 0
        %1251 = vmatpush1.bf16.xpose.msra.mxu0 0
        %1252 = vmatprep.subr.bf16.mxu0 0
        %1253 = vmatpush1.bf16.xpose.msra.mxu0 0
        %1254 = vmatprep.subr.bf16.mxu0 0
        %1255 = vmatpush1.bf16.xpose.msra.mxu0 0
        %1256 = vmatprep.subr.bf16.mxu0 0
        %1257 = vmatpush1.bf16.xpose.msra.mxu0 0
        %1258 = vmatprep.subr.bf16.mxu0 0
        %1259 = vmatpush1.bf16.xpose.msra.mxu0 0
        %1260 = vmatprep.mubr.bf16.mxu0 0
        %1261 = vmatmul.mubr.bf16.gmra.mrb[0].mxu0 %v1223
        %v1262 = vpop.f32.mrb[0].mxu0
        %v1263 = vadd.f32 0.0, %v1262
        %v1264 = vpop.f32.mrb[0].mxu0
        %v1265 = vpop.f32.mrb[0].mxu0
        %v1266 = vpop.f32.mrb[0].mxu0
        %1267 = vdwg.mxu0
        %v1268 = vsel %vm944, -1e+09, %v1263
        %v1269 = vsel %vm895, %v1268, -inf
        %1270 = vmax.xlane.f32.xlu0 %v1269
        %v1271 = vpop.xlane.xlu0 %1270
        %v1272 = vsub.f32 %v1268, %v1271
        %v1273 = vmul.f32 %v1272, 1.442695
        %v1274 = vpow.pop %v1273
        %v1275 = vsel %vm895, %v1274, 0.0
        %1276 = vadd.xlane.f32.xlu0 %v1275
        %v1277 = vpop.xlane.xlu0 %1276
        %v1278 = vrcp.pop %v1277
        %v1279 = vmul.f32 %v1274, %v1278
        %v1280 = vpack.c.bf16 %v1279, %v1279
        %1281 = vrot.lane.b32.xlu0 %v884, 112
        %v1282 = vpop.permute.xlu0 %1281
        %v1284 = vsel %vm895, %v1280, 0
        %v1287 = vsel %vm961, %v1282, 0
        %1289 = vmatprep.subr.bf16.mxu0 0
        %1290 = vmatpush1.bf16.msra.mxu0 %v1287
        %1291 = vmatprep.subr.bf16.mxu0 0
        %1292 = vmatpush1.bf16.msra.mxu0 0
        %1293 = vmatprep.subr.bf16.mxu0 0
        %1294 = vmatpush1.bf16.msra.mxu0 0
        %1295 = vmatprep.subr.bf16.mxu0 0
        %1296 = vmatpush1.bf16.msra.mxu0 0
        %1297 = vmatprep.subr.bf16.mxu0 0
        %1298 = vmatpush1.bf16.msra.mxu0 0
        %1299 = vmatprep.subr.bf16.mxu0 0
        %1300 = vmatpush1.bf16.msra.mxu0 0
        %1301 = vmatprep.subr.bf16.mxu0 0
        %1302 = vmatpush1.bf16.msra.mxu0 0
        %1303 = vmatprep.subr.bf16.mxu0 0
        %1304 = vmatpush1.bf16.msra.mxu0 0
        %1305 = vmatprep.subr.bf16.mxu0 0
        %1306 = vmatpush1.bf16.msra.mxu0 0
        %1307 = vmatprep.subr.bf16.mxu0 0
        %1308 = vmatpush1.bf16.msra.mxu0 0
        %1309 = vmatprep.subr.bf16.mxu0 0
        %1310 = vmatpush1.bf16.msra.mxu0 0
        %1311 = vmatprep.subr.bf16.mxu0 0
        %1312 = vmatpush1.bf16.msra.mxu0 0
        %1313 = vmatprep.subr.bf16.mxu0 0
        %1314 = vmatpush1.bf16.msra.mxu0 0
        %1315 = vmatprep.subr.bf16.mxu0 0
        %1316 = vmatpush1.bf16.msra.mxu0 0
        %1317 = vmatprep.subr.bf16.mxu0 0
        %1318 = vmatpush1.bf16.msra.mxu0 0
        %1319 = vmatprep.subr.bf16.mxu0 0
        %1320 = vmatpush1.bf16.msra.mxu0 0
        %1321 = vmatprep.mubr.bf16.mxu0 0
        %1322 = vmatmul.mubr.bf16.gmra.mrb[0].mxu0 %v1284
        %v1323 = vpop.f32.mrb[0].mxu0
        %v1324 = vadd.f32 0.0, %v1323
        %v1325 = vpop.f32.mrb[0].mxu0
        %v1326 = vpop.f32.mrb[0].mxu0
        %v1327 = vpop.f32.mrb[0].mxu0
        %1328 = vdwg.mxu0
        %v1329 = vpack.c.bf16 %v1324, %v1324
        %s1330 = scalar_lea.vmem %s9, 8
        %v1331 = vld [vmem:[%s1330] sm:$0xf]
        %v1333 = vsel %vm895, %v1329, 0
        %v1336 = vsel %vm961, %v1331, 0
        %1338 = vmatprep.subr.bf16.mxu0 0
        %1339 = vmatpush1.bf16.msra.mxu0 %v1336
        %1340 = vmatprep.subr.bf16.mxu0 0
        %1341 = vmatpush1.bf16.msra.mxu0 0
        %1342 = vmatprep.subr.bf16.mxu0 0
        %1343 = vmatpush1.bf16.msra.mxu0 0
        %1344 = vmatprep.subr.bf16.mxu0 0
        %1345 = vmatpush1.bf16.msra.mxu0 0
        %1346 = vmatprep.subr.bf16.mxu0 0
        %1347 = vmatpush1.bf16.msra.mxu0 0
        %1348 = vmatprep.subr.bf16.mxu0 0
        %1349 = vmatpush1.bf16.msra.mxu0 0
        %1350 = vmatprep.subr.bf16.mxu0 0
        %1351 = vmatpush1.bf16.msra.mxu0 0
        %1352 = vmatprep.subr.bf16.mxu0 0
        %1353 = vmatpush1.bf16.msra.mxu0 0
        %1354 = vmatprep.subr.bf16.mxu0 0
        %1355 = vmatpush1.bf16.msra.mxu0 0
        %1356 = vmatprep.subr.bf16.mxu0 0
        %1357 = vmatpush1.bf16.msra.mxu0 0
        %1358 = vmatprep.subr.bf16.mxu0 0
        %1359 = vmatpush1.bf16.msra.mxu0 0
        %1360 = vmatprep.subr.bf16.mxu0 0
        %1361 = vmatpush1.bf16.msra.mxu0 0
        %1362 = vmatprep.subr.bf16.mxu0 0
        %1363 = vmatpush1.bf16.msra.mxu0 0
        %1364 = vmatprep.subr.bf16.mxu0 0
        %1365 = vmatpush1.bf16.msra.mxu0 0
        %1366 = vmatprep.subr.bf16.mxu0 0
        %1367 = vmatpush1.bf16.msra.mxu0 0
        %1368 = vmatprep.subr.bf16.mxu0 0
        %1369 = vmatpush1.bf16.msra.mxu0 0
        %1370 = vmatprep.mubr.bf16.mxu0 0
        %1371 = vmatmul.mubr.bf16.gmra.mrb[0].mxu0 %v1333
        %v1372 = vpop.f32.mrb[0].mxu0
        %v1373 = vadd.f32 0.0, %v1372
        %v1374 = vpop.f32.mrb[0].mxu0
        %v1375 = vpop.f32.mrb[0].mxu0
        %v1376 = vpop.f32.mrb[0].mxu0
        %1377 = vdwg.mxu0
        %v1378 = vadd.f32 %v1217, %v1373
        %1379 = vrot.lane.b32.xlu0 %v882, 104
        %v1380 = vpop.permute.xlu0 %1379
        %1381 = vrot.lane.b32.xlu0 %v883, 104
        %v1382 = vpop.permute.xlu0 %1381
        %v1384 = vsel %vm895, %v1380, 0
        %v1387 = vsel %vm895, %v1382, 0
        %1389 = vmatprep.subr.bf16.mxu0 0
        %1390 = vmatpush1.bf16.xpose.msra.mxu0 %v1387
        %1391 = vmatprep.subr.bf16.mxu0 0
        %1392 = vmatpush1.bf16.xpose.msra.mxu0 0
        %1393 = vmatprep.subr.bf16.mxu0 0
        %1394 = vmatpush1.bf16.xpose.msra.mxu0 0
        %1395 = vmatprep.subr.bf16.mxu0 0
        %1396 = vmatpush1.bf16.xpose.msra.mxu0 0
        %1397 = vmatprep.subr.bf16.mxu0 0
        %1398 = vmatpush1.bf16.xpose.msra.mxu0 0
        %1399 = vmatprep.subr.bf16.mxu0 0
        %1400 = vmatpush1.bf16.xpose.msra.mxu0 0
        %1401 = vmatprep.subr.bf16.mxu0 0
        %1402 = vmatpush1.bf16.xpose.msra.mxu0 0
        %1403 = vmatprep.subr.bf16.mxu0 0
        %1404 = vmatpush1.bf16.xpose.msra.mxu0 0
        %1405 = vmatprep.subr.bf16.mxu0 0
        %1406 = vmatpush1.bf16.xpose.msra.mxu0 0
        %1407 = vmatprep.subr.bf16.mxu0 0
        %1408 = vmatpush1.bf16.xpose.msra.mxu0 0
        %1409 = vmatprep.subr.bf16.mxu0 0
        %1410 = vmatpush1.bf16.xpose.msra.mxu0 0
        %1411 = vmatprep.subr.bf16.mxu0 0
        %1412 = vmatpush1.bf16.xpose.msra.mxu0 0
        %1413 = vmatprep.subr.bf16.mxu0 0
        %1414 = vmatpush1.bf16.xpose.msra.mxu0 0
        %1415 = vmatprep.subr.bf16.mxu0 0
        %1416 = vmatpush1.bf16.xpose.msra.mxu0 0
        %1417 = vmatprep.subr.bf16.mxu0 0
        %1418 = vmatpush1.bf16.xpose.msra.mxu0 0
        %1419 = vmatprep.subr.bf16.mxu0 0
        %1420 = vmatpush1.bf16.xpose.msra.mxu0 0
        %1421 = vmatprep.mubr.bf16.mxu0 0
        %1422 = vmatmul.mubr.bf16.gmra.mrb[0].mxu0 %v1384
        %v1423 = vpop.f32.mrb[0].mxu0
        %v1424 = vadd.f32 0.0, %v1423
        %v1425 = vpop.f32.mrb[0].mxu0
        %v1426 = vpop.f32.mrb[0].mxu0
        %v1427 = vpop.f32.mrb[0].mxu0
        %1428 = vdwg.mxu0
        %v1429 = vsel %vm944, -1e+09, %v1424
        %v1430 = vsel %vm895, %v1429, -inf
        %1431 = vmax.xlane.f32.xlu0 %v1430
        %v1432 = vpop.xlane.xlu0 %1431
        %v1433 = vsub.f32 %v1429, %v1432
        %v1434 = vmul.f32 %v1433, 1.442695
        %v1435 = vpow.pop %v1434
        %v1436 = vsel %vm895, %v1435, 0.0
        %1437 = vadd.xlane.f32.xlu0 %v1436
        %v1438 = vpop.xlane.xlu0 %1437
        %v1439 = vrcp.pop %v1438
        %v1440 = vmul.f32 %v1435, %v1439
        %v1441 = vpack.c.bf16 %v1440, %v1440
        %1442 = vrot.lane.b32.xlu0 %v884, 104
        %v1443 = vpop.permute.xlu0 %1442
        %v1445 = vsel %vm895, %v1441, 0
        %v1448 = vsel %vm961, %v1443, 0
        %1450 = vmatprep.subr.bf16.mxu0 0
        %1451 = vmatpush1.bf16.msra.mxu0 %v1448
        %1452 = vmatprep.subr.bf16.mxu0 0
        %1453 = vmatpush1.bf16.msra.mxu0 0
        %1454 = vmatprep.subr.bf16.mxu0 0
        %1455 = vmatpush1.bf16.msra.mxu0 0
        %1456 = vmatprep.subr.bf16.mxu0 0
        %1457 = vmatpush1.bf16.msra.mxu0 0
        %1458 = vmatprep.subr.bf16.mxu0 0
        %1459 = vmatpush1.bf16.msra.mxu0 0
        %1460 = vmatprep.subr.bf16.mxu0 0
        %1461 = vmatpush1.bf16.msra.mxu0 0
        %1462 = vmatprep.subr.bf16.mxu0 0
        %1463 = vmatpush1.bf16.msra.mxu0 0
        %1464 = vmatprep.subr.bf16.mxu0 0
        %1465 = vmatpush1.bf16.msra.mxu0 0
        %1466 = vmatprep.subr.bf16.mxu0 0
        %1467 = vmatpush1.bf16.msra.mxu0 0
        %1468 = vmatprep.subr.bf16.mxu0 0
        %1469 = vmatpush1.bf16.msra.mxu0 0
        %1470 = vmatprep.subr.bf16.mxu0 0
        %1471 = vmatpush1.bf16.msra.mxu0 0
        %1472 = vmatprep.subr.bf16.mxu0 0
        %1473 = vmatpush1.bf16.msra.mxu0 0
        %1474 = vmatprep.subr.bf16.mxu0 0
        %1475 = vmatpush1.bf16.msra.mxu0 0
        %1476 = vmatprep.subr.bf16.mxu0 0
        %1477 = vmatpush1.bf16.msra.mxu0 0
        %1478 = vmatprep.subr.bf16.mxu0 0
        %1479 = vmatpush1.bf16.msra.mxu0 0
        %1480 = vmatprep.subr.bf16.mxu0 0
        %1481 = vmatpush1.bf16.msra.mxu0 0
        %1482 = vmatprep.mubr.bf16.mxu0 0
        %1483 = vmatmul.mubr.bf16.gmra.mrb[0].mxu0 %v1445
        %v1484 = vpop.f32.mrb[0].mxu0
        %v1485 = vadd.f32 0.0, %v1484
        %v1486 = vpop.f32.mrb[0].mxu0
        %v1487 = vpop.f32.mrb[0].mxu0
        %v1488 = vpop.f32.mrb[0].mxu0
        %1489 = vdwg.mxu0
        %v1490 = vpack.c.bf16 %v1485, %v1485
        %s1491 = scalar_lea.vmem %s9, 12
        %v1492 = vld [vmem:[%s1491] sm:$0xf]
        %v1494 = vsel %vm895, %v1490, 0
        %v1497 = vsel %vm961, %v1492, 0
        %1499 = vmatprep.subr.bf16.mxu0 0
        %1500 = vmatpush1.bf16.msra.mxu0 %v1497
        %1501 = vmatprep.subr.bf16.mxu0 0
        %1502 = vmatpush1.bf16.msra.mxu0 0
        %1503 = vmatprep.subr.bf16.mxu0 0
        %1504 = vmatpush1.bf16.msra.mxu0 0
        %1505 = vmatprep.subr.bf16.mxu0 0
        %1506 = vmatpush1.bf16.msra.mxu0 0
        %1507 = vmatprep.subr.bf16.mxu0 0
        %1508 = vmatpush1.bf16.msra.mxu0 0
        %1509 = vmatprep.subr.bf16.mxu0 0
        %1510 = vmatpush1.bf16.msra.mxu0 0
        %1511 = vmatprep.subr.bf16.mxu0 0
        %1512 = vmatpush1.bf16.msra.mxu0 0
        %1513 = vmatprep.subr.bf16.mxu0 0
        %1514 = vmatpush1.bf16.msra.mxu0 0
        %1515 = vmatprep.subr.bf16.mxu0 0
        %1516 = vmatpush1.bf16.msra.mxu0 0
        %1517 = vmatprep.subr.bf16.mxu0 0
        %1518 = vmatpush1.bf16.msra.mxu0 0
        %1519 = vmatprep.subr.bf16.mxu0 0
        %1520 = vmatpush1.bf16.msra.mxu0 0
        %1521 = vmatprep.subr.bf16.mxu0 0
        %1522 = vmatpush1.bf16.msra.mxu0 0
        %1523 = vmatprep.subr.bf16.mxu0 0
        %1524 = vmatpush1.bf16.msra.mxu0 0
        %1525 = vmatprep.subr.bf16.mxu0 0
        %1526 = vmatpush1.bf16.msra.mxu0 0
        %1527 = vmatprep.subr.bf16.mxu0 0
        %1528 = vmatpush1.bf16.msra.mxu0 0
        %1529 = vmatprep.subr.bf16.mxu0 0
        %1530 = vmatpush1.bf16.msra.mxu0 0
        %1531 = vmatprep.mubr.bf16.mxu0 0
        %1532 = vmatmul.mubr.bf16.gmra.mrb[0].mxu0 %v1494
        %v1533 = vpop.f32.mrb[0].mxu0
        %v1534 = vadd.f32 0.0, %v1533
        %v1535 = vpop.f32.mrb[0].mxu0
        %v1536 = vpop.f32.mrb[0].mxu0
        %v1537 = vpop.f32.mrb[0].mxu0
        %1538 = vdwg.mxu0
        %v1539 = vadd.f32 %v1378, %v1534
        %v1540 = vsel %vm649, %v1539, 0.0
        %1541 = vadd.xlane.f32.xlu0 %v1540
        %v1542 = vpop.xlane.xlu0 %1541
        %v1543 = vmul.f32 %v1542, %v653
        %v1544 = vsub.f32 %v1539, %v1543
        %v1545 = vmul.f32 %v1544, %v1544
        %v1546 = vsel %vm649, %v1545, 0.0
        %1547 = vadd.xlane.f32.xlu0 %v1546
        %v1548 = vpop.xlane.xlu0 %1547
        %v1549 = vmul.f32 %v1548, %v660
        %v1550 = vrsqrt.pop %v1549
        %v1551 = vmul.f32 %v1549, %v1550
        %vm1552 = vcmp.eq.f32.partialorder %v1549, inf
        %v1553 = vsel %vm1552, %v1549, %v1551
        %vm1554 = vcmp.eq.f32.partialorder %v1549, 0.0
        %v1555 = vand.u32 %v1549, 2147483648
        %v1556 = vsel %vm1554, %v1555, %v1553
        %v1557 = vld [vmem:[#allocation13] sm:$0x1]
        %v1559 = vlaneseq
        %v1560 = vshrl.u32 %v1559, 7
        %v1561 = vsub.s32 0, %v1560
        %v1562 = vrot.slane %v1557, %v1561
        %v1564 = vmul.f32 %v1562, %v1544
        %v1565 = vadd.f32 %v1556, 1e-06
        %v1566 = vrcp.pop %v1565
        %v1567 = vmul.f32 %v1564, %v1566
        %v1568 = vld [vmem:[#allocation14] sm:$0x1]
        %v1570 = vlaneseq
        %v1571 = vshrl.u32 %v1570, 7
        %v1572 = vsub.s32 0, %v1571
        %v1573 = vrot.slane %v1568, %v1572
        %v1575 = vadd.f32 %v1567, %v1573
        %v1576 = vpack.c.bf16 %v1575, %v1575
        %v1577 = vld [vmem:[%s13] sm:$0xf]
        %v1578 = vld [vmem:[%s13 + $0x4] sm:$0xf]
        %v1579 = vld [vmem:[%s13 + $0x8] sm:$0xf]
        %v1580 = vld [vmem:[%s13 + $0xc] sm:$0xf]
        %v1581 = vld [vmem:[%s14] sm:$0x1]
        %v1583 = vlaneseq
        %v1584 = vshrl.u32 %v1583, 7
        %v1585 = vsub.s32 0, %v1584
        %v1586 = vrot.slane %v1581, %v1585
        %v1592 = vunpack.c.l.b16 %v1577
        %v1593 = vunpack.c.l.b16 %v1578
        %v1594 = vunpack.c.l.b16 %v1579
        %v1595 = vunpack.c.l.b16 %v1580
        %v1596 = vpack.c.b16 %v1593, %v1592
        %v1597 = vpack.c.b16 %v1595, %v1594
        %v1601 = vsel %vm649, %v1576, 0
        %1603 = vmatprep.subr.bf16.mxu0 0
        %1604 = vmatpush1.bf16.msra.mxu0 %v1596
        %1605 = vmatprep.subr.bf16.mxu0 0
        %1606 = vmatpush1.bf16.msra.mxu0 %v1597
        %1607 = vmatprep.subr.bf16.mxu0 0
        %1608 = vmatpush1.bf16.msra.mxu0 0
        %1609 = vmatprep.subr.bf16.mxu0 0
        %1610 = vmatpush1.bf16.msra.mxu0 0
        %1611 = vmatprep.subr.bf16.mxu0 0
        %1612 = vmatpush1.bf16.msra.mxu0 0
        %1613 = vmatprep.subr.bf16.mxu0 0
        %1614 = vmatpush1.bf16.msra.mxu0 0
        %1615 = vmatprep.subr.bf16.mxu0 0
        %1616 = vmatpush1.bf16.msra.mxu0 0
        %1617 = vmatprep.subr.bf16.mxu0 0
        %1618 = vmatpush1.bf16.msra.mxu0 0
        %1619 = vmatprep.subr.bf16.mxu0 0
        %1620 = vmatpush1.bf16.msra.mxu0 0
        %1621 = vmatprep.subr.bf16.mxu0 0
        %1622 = vmatpush1.bf16.msra.mxu0 0
        %1623 = vmatprep.subr.bf16.mxu0 0
        %1624 = vmatpush1.bf16.msra.mxu0 0
        %1625 = vmatprep.subr.bf16.mxu0 0
        %1626 = vmatpush1.bf16.msra.mxu0 0
        %1627 = vmatprep.subr.bf16.mxu0 0
        %1628 = vmatpush1.bf16.msra.mxu0 0
        %1629 = vmatprep.subr.bf16.mxu0 0
        %1630 = vmatpush1.bf16.msra.mxu0 0
        %1631 = vmatprep.subr.bf16.mxu0 0
        %1632 = vmatpush1.bf16.msra.mxu0 0
        %1633 = vmatprep.subr.bf16.mxu0 0
        %1634 = vmatpush1.bf16.msra.mxu0 0
        %1635 = vmatprep.mubr.bf16.mxu0 0
        %1636 = vmatmul.mubr.bf16.gmra.mrb[0].mxu0 %v1601
        %v1637 = vpop.f32.mrb[0].mxu0
        %v1638 = vadd.f32 %v1586, %v1637
        %v1639 = vpop.f32.mrb[0].mxu0
        %v1640 = vpop.f32.mrb[0].mxu0
        %v1641 = vpop.f32.mrb[0].mxu0
        %1642 = vdwg.mxu0
        %v1643 = vmax.f32 %v1638, 0.0
        %v1644 = vpack.c.bf16 %v1643, %v1643
        %v1645 = vld [vmem:[%s15] sm:$0xf]
        %v1646 = vld [vmem:[%s15 + $0x4] sm:$0xf]
        %v1647 = vld [vmem:[%s15 + $0x8] sm:$0xf]
        %v1648 = vld [vmem:[%s15 + $0xc] sm:$0xf]
        %v1649 = vld [vmem:[%s15 + $0x10] sm:$0xf]
        %v1650 = vld [vmem:[%s15 + $0x14] sm:$0xf]
        %v1651 = vld [vmem:[%s15 + $0x18] sm:$0xf]
        %v1652 = vld [vmem:[%s15 + $0x1c] sm:$0xf]
        %v1661 = vunpack.c.l.b16 %v1645
        %v1662 = vunpack.c.l.b16 %v1646
        %v1663 = vunpack.c.l.b16 %v1647
        %v1664 = vunpack.c.l.b16 %v1648
        %v1665 = vunpack.c.l.b16 %v1649
        %v1666 = vunpack.c.l.b16 %v1650
        %v1667 = vunpack.c.l.b16 %v1651
        %v1668 = vunpack.c.l.b16 %v1652
        %v1669 = vpack.c.b16 %v1662, %v1661
        %v1670 = vpack.c.b16 %v1664, %v1663
        %v1671 = vpack.c.b16 %v1666, %v1665
        %v1672 = vpack.c.b16 %v1668, %v1667
        %vm1677 = vcmask 523264
        %v1679 = vsel %vm1677, %v1644, 0
        %1681 = vmatprep.subr.bf16.mxu0 0
        %1682 = vmatpush1.bf16.msra.mxu0 %v1669
        %1683 = vmatprep.subr.bf16.mxu0 0
        %1684 = vmatpush1.bf16.msra.mxu0 %v1670
        %1685 = vmatprep.subr.bf16.mxu0 0
        %1686 = vmatpush1.bf16.msra.mxu0 %v1671
        %1687 = vmatprep.subr.bf16.mxu0 0
        %1688 = vmatpush1.bf16.msra.mxu0 %v1672
        %1689 = vmatprep.subr.bf16.mxu0 0
        %1690 = vmatpush1.bf16.msra.mxu0 0
        %1691 = vmatprep.subr.bf16.mxu0 0
        %1692 = vmatpush1.bf16.msra.mxu0 0
        %1693 = vmatprep.subr.bf16.mxu0 0
        %1694 = vmatpush1.bf16.msra.mxu0 0
        %1695 = vmatprep.subr.bf16.mxu0 0
        %1696 = vmatpush1.bf16.msra.mxu0 0
        %1697 = vmatprep.subr.bf16.mxu0 0
        %1698 = vmatpush1.bf16.msra.mxu0 0
        %1699 = vmatprep.subr.bf16.mxu0 0
        %1700 = vmatpush1.bf16.msra.mxu0 0
        %1701 = vmatprep.subr.bf16.mxu0 0
        %1702 = vmatpush1.bf16.msra.mxu0 0
        %1703 = vmatprep.subr.bf16.mxu0 0
        %1704 = vmatpush1.bf16.msra.mxu0 0
        %1705 = vmatprep.subr.bf16.mxu0 0
        %1706 = vmatpush1.bf16.msra.mxu0 0
        %1707 = vmatprep.subr.bf16.mxu0 0
        %1708 = vmatpush1.bf16.msra.mxu0 0
        %1709 = vmatprep.subr.bf16.mxu0 0
        %1710 = vmatpush1.bf16.msra.mxu0 0
        %1711 = vmatprep.subr.bf16.mxu0 0
        %1712 = vmatpush1.bf16.msra.mxu0 0
        %1713 = vmatprep.mubr.bf16.mxu0 0
        %1714 = vmatmul.mubr.bf16.gmra.mrb[0].mxu0 %v1679
        %v1715 = vpop.f32.mrb[0].mxu0
        %v1716 = vadd.f32 0.0, %v1715
        %v1717 = vpop.f32.mrb[0].mxu0
        %v1718 = vpop.f32.mrb[0].mxu0
        %v1719 = vpop.f32.mrb[0].mxu0
        %1720 = vdwg.mxu0
        %v1721 = vadd.f32 %v1539, %v1716
        %v1722 = vld [vmem:[%s16] sm:$0x1]
        %v1724 = vlaneseq
        %v1725 = vshrl.u32 %v1724, 7
        %v1726 = vsub.s32 0, %v1725
        %v1727 = vrot.slane %v1722, %v1726
        %v1729 = vadd.f32 %v1721, %v1727
        %1730 = vst.msk [vmem:[%s642] sm:$0xff] %vm649, %v1729
        %s1731 = sand.u32 %s406, 1
        %s1732 = scalar_lea.sflag [#allocation4], %s1731
        %s1733 = sand.u32 %s406, 1
        %s1734 = smul.addr %s1733, 8
        %s1735 = scalar_lea.vmem [#allocation16], %s1734
        // Predicated region
        $region121: #{tpu_custom_call.1} parent=87 // pred_check
          %p1736 = pneg %p416
        $region122: #{tpu_custom_call.1} parent=87 // pred_check_branch
          %1738 = sbr.rel (%p1736) target = $region124
        $region123: #{tpu_custom_call.1} parent=87 // pred_region
          %s1740 = ssub.s32 128, 128
          %1741 = vsyncadd %s1732, %s1740
          %s1742 = smul.addr %s36, 128
          %s1743 = scalar_lea.hbm %s17, %s1742
          %s1745 = sshll.u32 %s1735, 4
          %s1746 = int_to_ptr.vmem [resolvable:$true] %s1745
          %1748 = dma.vmem_to_hbm [thread:$0]  %s1746, 128, %s1743, %s1732
        $region124: #{tpu_custom_call.1} parent=87 // pred_fallthru
          _
      $region88: #{tpu_custom_call.1} parent=5 // pred_fallthru
        _
      %p1749 = scmp.le.s32.totalorder 2, %s31
      // Predicated region
      $region125: #{tpu_custom_call.1} parent=5 // pred_check
        %p1750 = pneg %p1749
      $region126: #{tpu_custom_call.1} parent=5 // pred_check_branch
        %1752 = sbr.rel (%p1750) target = $region128
      $region127: #{tpu_custom_call.1} parent=5 // pred_region
        %s1753 = ssub.s32 %s31, 2
        // Predicated region
        $region129: #{tpu_custom_call.1} parent=127 // pred_check
          %p1754 = pneg %p422
        $region130: #{tpu_custom_call.1} parent=127 // pred_check_branch
          %1756 = sbr.rel (%p1754) target = $region132
        $region131: #{tpu_custom_call.1} parent=127 // pred_region
          %s1757 = sand.u32 %s407, 1
          %s1758 = scalar_lea.sflag [#allocation4], %s1757
          %s1759 = sand.u32 %s407, 1
          %s1760 = smul.addr %s1759, 8
          %s1761 = scalar_lea.vmem [#allocation16], %s1760
          %1762 = dma.done %s1758, 128
        $region132: #{tpu_custom_call.1} parent=127 // pred_fallthru
          _
      $region128: #{tpu_custom_call.1} parent=5 // pred_fallthru
        _
    $region6: #{tpu_custom_call.1} parent=1 // loop_footer
      %s35 = sadd.s32 1, %s31
    $region7: #{tpu_custom_call.1} parent=1 // loop_footer_branch
      %30 = sbr.rel target = $region3
    $region8: #{tpu_custom_call.1} parent=1 // loop_exit
      _
    %1763 = vsyncpa [#allocation3], 1
    %s1764 = scalar_lea.sflag [#allocation3], 1
    %1765 = vsyncpa %s1764, 1
    %1766 = vsyncpa [#allocation6], 1
    %1767 = vsyncpa [#allocation9], 1
    %1768 = vsyncpa [#allocation12], 1
    %1769 = vsyncpa [#allocation15], 1
    %1770 = vsyncpa [#allocation4], 1
    %s1771 = scalar_lea.sflag [#allocation4], 1
    %1772 = vsyncpa %s1771, 1

</llo_original>
